<compile_context>
chip_gen: v6e
topology: v6e:2x2x1
jax: 0.10.0
libtpu: 0.0.40
codegen_flags: <defaults>
</compile_context>

<pallas_src>
import jax
import jax.numpy as jnp
from jax.experimental import pallas as pl
from jax.experimental.pallas import tpu as pltpu

# Ant-v4-like sizes (synthetic, deterministic init — no checkpoint load).
OBSERVATION_SHAPE = 27
ACTION_SHAPE = 8
LAYER1 = 400
LAYER2 = 300

OUT_PAD = 128   # lane-dense padded output width; actions live in [:, :ACTION_SHAPE]
TILE_B = 256    # batch tile (multiple of 256 for v6e/v7x MXU, of 128 for v5e)


def actor_kernel(x_ref, w1_ref, b1_ref, w2_ref, b2_ref, w3_ref, b3_ref, o_ref):
    # bf16 operands on the MXU, f32 accumulation, f32 bias add / ReLU / tanh.
    x = x_ref[...].astype(jnp.bfloat16)
    h1 = jnp.dot(x, w1_ref[...], preferred_element_type=jnp.float32) + b1_ref[...]
    h1 = jnp.maximum(h1, 0.0).astype(jnp.bfloat16)
    h2 = jnp.dot(h1, w2_ref[...], preferred_element_type=jnp.float32) + b2_ref[...]
    h2 = jnp.maximum(h2, 0.0).astype(jnp.bfloat16)
    mu = jnp.dot(h2, w3_ref[...], preferred_element_type=jnp.float32) + b3_ref[...]
    o_ref[...] = jnp.tanh(mu).astype(o_ref.dtype)


def actor_forward(state, kernel_params):
    """state: [B, obs_dim] f32 -> [B, action_dim] f32."""
    w1, b1, w2, b2, w3p, b3p = kernel_params
    B = state.shape[0]
    n_tiles = pl.cdiv(B, TILE_B)
    pB = n_tiles * TILE_B
    if pB != B:
        state = jnp.pad(state, ((0, pB - B), (0, 0)))

    # Advisory cost so XLA schedules neighbors around the custom call sensibly.
    flops = 2 * pB * (OBSERVATION_SHAPE * LAYER1 + LAYER1 * LAYER2 + LAYER2 * OUT_PAD)
    bytes_accessed = (
        (w1.size + w2.size + w3p.size) * 2          # bf16 weights
        + (b1.size + b2.size + b3p.size) * 4        # f32 biases
        + pB * OBSERVATION_SHAPE * 4                # state in
        + pB * OUT_PAD * 4                          # output out
    )
    cost = pl.CostEstimate(flops=flops, transcendentals=pB * OUT_PAD,
                           bytes_accessed=bytes_accessed)

    const2 = lambda i: (0, 0)
    out = pl.pallas_call(
        actor_kernel,
        out_shape=jax.ShapeDtypeStruct((pB, OUT_PAD), jnp.float32),
        grid=(n_tiles,),
        in_specs=[
            pl.BlockSpec((TILE_B, OBSERVATION_SHAPE), lambda i: (i, 0)),
            pl.BlockSpec(w1.shape, const2), pl.BlockSpec(b1.shape, const2),
            pl.BlockSpec(w2.shape, const2), pl.BlockSpec(b2.shape, const2),
            pl.BlockSpec(w3p.shape, const2), pl.BlockSpec(b3p.shape, const2),
        ],
        out_specs=pl.BlockSpec((TILE_B, OUT_PAD), lambda i: (i, 0)),
        compiler_params=pltpu.CompilerParams(
            dimension_semantics=("parallel",),
        ),
        cost_estimate=cost,
    )(state, w1, b1, w2, b2, w3p, b3p)

    return out[:B, :ACTION_SHAPE]


def init_params(key):
    """Deterministic init matching torch.nn.Linear default:
    U(-1/sqrt(fan_in), 1/sqrt(fan_in)) for weights and biases.
    Weights stored as (in, out). Returns (kernel_params, f32_params)."""
    keys = jax.random.split(key, 6)

    def linear(kw, kb, fan_in, fan_out):
        bound = 1.0 / jnp.sqrt(jnp.float32(fan_in))
        w = jax.random.uniform(kw, (fan_in, fan_out), jnp.float32, -bound, bound)
        b = jax.random.uniform(kb, (1, fan_out), jnp.float32, -bound, bound)
        return w, b

    w1, b1 = linear(keys[0], keys[1], OBSERVATION_SHAPE, LAYER1)
    w2, b2 = linear(keys[2], keys[3], LAYER1, LAYER2)
    w3, b3 = linear(keys[4], keys[5], LAYER2, ACTION_SHAPE)

    # Pad the mu layer to a lane-dense 128-wide output; padded columns are
    # exactly zero so tanh(0)=0 there and they are sliced off in the wrapper.
    w3p = jnp.pad(w3, ((0, 0), (0, OUT_PAD - ACTION_SHAPE)))
    b3p = jnp.pad(b3, ((0, 0), (0, OUT_PAD - ACTION_SHAPE)))

    kernel_params = (w1.astype(jnp.bfloat16), b1,
                     w2.astype(jnp.bfloat16), b2,
                     w3p.astype(jnp.bfloat16), b3p)
    f32_params = (w1, b1, w2, b2, w3, b3)
    return kernel_params, f32_params


def actor_forward_ref_bf16(state, kernel_params):
    """Pure-JAX reference using the same bf16 weights + f32 accumulation."""
    w1, b1, w2, b2, w3p, b3p = kernel_params
    x = state.astype(jnp.bfloat16)
    h1 = jnp.maximum(jnp.dot(x, w1, preferred_element_type=jnp.float32) + b1, 0.0)
    h1 = h1.astype(jnp.bfloat16)
    h2 = jnp.maximum(jnp.dot(h1, w2, preferred_element_type=jnp.float32) + b2, 0.0)
    h2 = h2.astype(jnp.bfloat16)
    mu = jnp.dot(h2, w3p, preferred_element_type=jnp.float32) + b3p
    return jnp.tanh(mu)[:, :ACTION_SHAPE]


def actor_forward_ref_f32(state, f32_params):
    """Full-precision reference (matches the torch module semantics)."""
    w1, b1, w2, b2, w3, b3 = f32_params
    h1 = jnp.maximum(state @ w1 + b1, 0.0)
    h2 = jnp.maximum(h1 @ w2 + b2, 0.0)
    return jnp.tanh(h2 @ w3 + b3)


if __name__ == "__main__":
    key = jax.random.PRNGKey(0)
    pkey, xkey = jax.random.split(key)

    kernel_params, f32_params = init_params(pkey)
    batch = 2
    state = jax.random.normal(xkey, (batch, OBSERVATION_SHAPE), jnp.float32)

    out = actor_forward(state, kernel_params)
    out = jax.block_until_ready(out)
    assert out.shape == (batch, ACTION_SHAPE)

    # Tight check against a reference with identical bf16/f32 mixed precision.
    ref_bf16 = actor_forward_ref_bf16(state, kernel_params)
    assert jnp.allclose(out, ref_bf16, atol=2e-3, rtol=2e-3), "mismatch vs bf16 reference"

    # Loose check against the full-f32 torch-equivalent forward.
    ref_f32 = actor_forward_ref_f32(state, f32_params)
    assert jnp.allclose(out, ref_f32, atol=5e-2, rtol=5e-2), "mismatch vs f32 reference"

    print("KERNEL_OK")
</pallas_src>

<mosaic_0001>
module attributes {stable_mosaic.version = 11 : i64} {
  func.func @actor_kernel(%arg0: i32, %arg1: memref<256x27xf32, #tpu.memory_space<vmem>>, %arg2: memref<27x400xbf16, #tpu.memory_space<vmem>>, %arg3: memref<1x400xf32, #tpu.memory_space<vmem>>, %arg4: memref<400x300xbf16, #tpu.memory_space<vmem>>, %arg5: memref<1x300xf32, #tpu.memory_space<vmem>>, %arg6: memref<300x128xbf16, #tpu.memory_space<vmem>>, %arg7: memref<1x128xf32, #tpu.memory_space<vmem>>, %arg8: memref<256x128xf32, #tpu.memory_space<vmem>>) attributes {dimension_semantics = [#tpu.dimension_semantics<parallel>], iteration_bounds = array<i64: 1>, scalar_prefetch = 0 : i64, scratch_operands = 0 : i64, tpu.core_type = #tpu.core_type<tc>, window_params = [{transform_indices = @transform_0, window_bounds = array<i64: 256, 27>}, {pipeline_mode = #tpu.pipeline_mode<synchronous>, transform_indices = @transform_1, window_bounds = array<i64: 27, 400>}, {pipeline_mode = #tpu.pipeline_mode<synchronous>, transform_indices = @transform_2, window_bounds = array<i64: 1, 400>}, {pipeline_mode = #tpu.pipeline_mode<synchronous>, transform_indices = @transform_3, window_bounds = array<i64: 400, 300>}, {pipeline_mode = #tpu.pipeline_mode<synchronous>, transform_indices = @transform_4, window_bounds = array<i64: 1, 300>}, {pipeline_mode = #tpu.pipeline_mode<synchronous>, transform_indices = @transform_5, window_bounds = array<i64: 300, 128>}, {pipeline_mode = #tpu.pipeline_mode<synchronous>, transform_indices = @transform_6, window_bounds = array<i64: 1, 128>}, {transform_indices = @transform_7, window_bounds = array<i64: 256, 128>}]} {
    %c0 = arith.constant 0 : index
    %c0_0 = arith.constant 0 : index
    %0 = vector.load %arg1[%c0, %c0_0] : memref<256x27xf32, #tpu.memory_space<vmem>>, vector<256x27xf32>
    %1 = arith.truncf %0 : vector<256x27xf32> to vector<256x27xbf16>
    %c0_1 = arith.constant 0 : index
    %c0_2 = arith.constant 0 : index
    %2 = vector.load %arg2[%c0_1, %c0_2] : memref<27x400xbf16, #tpu.memory_space<vmem>>, vector<27x400xbf16>
    %cst = arith.constant dense<0.000000e+00> : vector<256x400xf32>
    %3 = tpu.matmul %1, %2, %cst {dimension_numbers = #tpu.dot_dimension_numbers<[1], [0], [0], [1], [0, 0, 1, 1], [], []>} : vector<256x27xbf16>, vector<27x400xbf16>, vector<256x400xf32> -> vector<256x400xf32>
    %c0_3 = arith.constant 0 : index
    %c0_4 = arith.constant 0 : index
    %4 = vector.load %arg3[%c0_3, %c0_4] : memref<1x400xf32, #tpu.memory_space<vmem>>, vector<1x400xf32>
    %5 = vector.broadcast %4 : vector<1x400xf32> to vector<256x400xf32>
    %6 = arith.addf %3, %5 : vector<256x400xf32>
    %cst_5 = arith.constant 0.000000e+00 : f32
    %7 = vector.broadcast %cst_5 : f32 to vector<256x400xf32>
    %8 = arith.maximumf %6, %7 : vector<256x400xf32>
    %9 = arith.truncf %8 : vector<256x400xf32> to vector<256x400xbf16>
    %c0_6 = arith.constant 0 : index
    %c0_7 = arith.constant 0 : index
    %10 = vector.load %arg4[%c0_6, %c0_7] : memref<400x300xbf16, #tpu.memory_space<vmem>>, vector<400x300xbf16>
    %cst_8 = arith.constant dense<0.000000e+00> : vector<256x300xf32>
    %11 = tpu.matmul %9, %10, %cst_8 {dimension_numbers = #tpu.dot_dimension_numbers<[1], [0], [0], [1], [0, 0, 1, 1], [], []>} : vector<256x400xbf16>, vector<400x300xbf16>, vector<256x300xf32> -> vector<256x300xf32>
    %c0_9 = arith.constant 0 : index
    %c0_10 = arith.constant 0 : index
    %12 = vector.load %arg5[%c0_9, %c0_10] : memref<1x300xf32, #tpu.memory_space<vmem>>, vector<1x300xf32>
    %13 = vector.broadcast %12 : vector<1x300xf32> to vector<256x300xf32>
    %14 = arith.addf %11, %13 : vector<256x300xf32>
    %cst_11 = arith.constant 0.000000e+00 : f32
    %15 = vector.broadcast %cst_11 : f32 to vector<256x300xf32>
    %16 = arith.maximumf %14, %15 : vector<256x300xf32>
    %17 = arith.truncf %16 : vector<256x300xf32> to vector<256x300xbf16>
    %c0_12 = arith.constant 0 : index
    %c0_13 = arith.constant 0 : index
    %18 = vector.load %arg6[%c0_12, %c0_13] : memref<300x128xbf16, #tpu.memory_space<vmem>>, vector<300x128xbf16>
    %cst_14 = arith.constant dense<0.000000e+00> : vector<256x128xf32>
    %19 = tpu.matmul %17, %18, %cst_14 {dimension_numbers = #tpu.dot_dimension_numbers<[1], [0], [0], [1], [0, 0, 1, 1], [], []>} : vector<256x300xbf16>, vector<300x128xbf16>, vector<256x128xf32> -> vector<256x128xf32>
    %c0_15 = arith.constant 0 : index
    %c0_16 = arith.constant 0 : index
    %20 = vector.load %arg7[%c0_15, %c0_16] : memref<1x128xf32, #tpu.memory_space<vmem>>, vector<1x128xf32>
    %21 = vector.broadcast %20 : vector<1x128xf32> to vector<256x128xf32>
    %22 = arith.addf %19, %21 : vector<256x128xf32>
    %23 = math.tanh %22 : vector<256x128xf32>
    %c0_17 = arith.constant 0 : index
    %c0_18 = arith.constant 0 : index
    %24 = vector.load %arg8[%c0_17, %c0_18] : memref<256x128xf32, #tpu.memory_space<vmem>>, vector<256x128xf32>
    tpu.vector_store %arg8[%c0_17, %c0_18], %23 {strides = array<i32>} : memref<256x128xf32, #tpu.memory_space<vmem>>, vector<256x128xf32>,
    return
  }
  func.func @transform_0(%arg0: i32) -> (i32, i32) {
    %c0_i32 = arith.constant 0 : i32
    %c0_i32_0 = arith.constant 0 : i32
    return %arg0, %c0_i32 : i32, i32
  }
  func.func @transform_1(%arg0: i32) -> (i32, i32) {
    %c0_i32 = arith.constant 0 : i32
    %c0_i32_0 = arith.constant 0 : i32
    %c0_i32_1 = arith.constant 0 : i32
    return %c0_i32, %c0_i32_0 : i32, i32
  }
  func.func @transform_2(%arg0: i32) -> (i32, i32) {
    %c0_i32 = arith.constant 0 : i32
    %c0_i32_0 = arith.constant 0 : i32
    %c0_i32_1 = arith.constant 0 : i32
    return %c0_i32, %c0_i32_0 : i32, i32
  }
  func.func @transform_3(%arg0: i32) -> (i32, i32) {
    %c0_i32 = arith.constant 0 : i32
    %c0_i32_0 = arith.constant 0 : i32
    %c0_i32_1 = arith.constant 0 : i32
    return %c0_i32, %c0_i32_0 : i32, i32
  }
  func.func @transform_4(%arg0: i32) -> (i32, i32) {
    %c0_i32 = arith.constant 0 : i32
    %c0_i32_0 = arith.constant 0 : i32
    %c0_i32_1 = arith.constant 0 : i32
    return %c0_i32, %c0_i32_0 : i32, i32
  }
  func.func @transform_5(%arg0: i32) -> (i32, i32) {
    %c0_i32 = arith.constant 0 : i32
    %c0_i32_0 = arith.constant 0 : i32
    %c0_i32_1 = arith.constant 0 : i32
    return %c0_i32, %c0_i32_0 : i32, i32
  }
  func.func @transform_6(%arg0: i32) -> (i32, i32) {
    %c0_i32 = arith.constant 0 : i32
    %c0_i32_0 = arith.constant 0 : i32
    %c0_i32_1 = arith.constant 0 : i32
    return %c0_i32, %c0_i32_0 : i32, i32
  }
  func.func @transform_7(%arg0: i32) -> (i32, i32) {
    %c0_i32 = arith.constant 0 : i32
    %c0_i32_0 = arith.constant 0 : i32
    return %arg0, %c0_i32 : i32, i32
  }
}

</mosaic_0001>

<llo_original>
// kernel: tpu_custom_call.1
$region0: #{tpu_custom_call.1}
  #allocation0 [shape = 'u32[]', space=smem, size = 0x4, offset = 0x4, fixed_abs, tag = 'smem constant byte address 0x4 - core index']
  #allocation1 [shape = 'u32[144,128]{1,0:T(1,128)}', space=vmem, size = 0x12000, scoped, tag = 'internal scratch']
  %s0 = inlined_call_operand.vmem [shape: f32[256,27], index: 0, kind: input, shape index: {}]
  %s1 = inlined_call_operand.vmem [shape: bf16[27,400], index: 1, kind: input, shape index: {}]
  %s2 = inlined_call_operand.vmem [shape: f32[1,400], index: 2, kind: input, shape index: {}]
  %s3 = inlined_call_operand.hbm [shape: bf16[400,300], index: 3, kind: input, shape index: {}]
  %s4 = inlined_call_operand.vmem [shape: f32[1,300], index: 4, kind: input, shape index: {}]
  %s5 = inlined_call_operand.vmem [shape: bf16[300,128], index: 5, kind: input, shape index: {}]
  %s6 = inlined_call_operand.vmem [shape: f32[1,128], index: 6, kind: input, shape index: {}]
  %s7 = inlined_call_operand.hbm [shape: f32[256,128], index: 7, kind: output, shape index: {}]
  %s8 = sld [smem:[#allocation0]]
  $region42: #{tpu_custom_call.1} parent=0
    _
  %s10 = ssub.s32 1, %s8
  %s11 = scalar_select 0, %s10, %s8
  $region1: #{tpu_custom_call.1} parent=0
    #allocation2 [shape = 'u8[307200]{0}', space=vmem, size = 0x4b000, scoped, tag = 'input window, operand 3, single buffered']
    #allocation3 [shape = 's32[1]{0}', space=sflag, size = 0x4, scoped, tag = 'scoped memory for tpu_custom_call.1']
    #allocation4 [shape = 's32[1]{0}', space=sflag, size = 0x4, scoped, tag = 'scoped memory for tpu_custom_call.1']
    #allocation5 [shape = 'u8[131072]{0}', space=vmem, size = 0x20000, scoped, tag = 'output window, operand 0, single buffered']
    %12 = vsyncpa [#allocation3], 0
    %13 = vsyncpa [#allocation4], 0
    // Predicated region
    $region2: #{tpu_custom_call.1} parent=1 // pred_check
      _
    $region3: #{tpu_custom_call.1} parent=1 // pred_check_branch
      %15 = sbr.rel (0) target = $region5
    $region4: #{tpu_custom_call.1} parent=1 // pred_region
      _
    $region5: #{tpu_custom_call.1} parent=1 // pred_fallthru
      _
    // Predicated region
    $region6: #{tpu_custom_call.1} parent=1 // pred_check
      _
    $region7: #{tpu_custom_call.1} parent=1 // pred_check_branch
      %17 = sbr.rel (0) target = $region9
    $region8: #{tpu_custom_call.1} parent=1 // pred_region
      _
    $region9: #{tpu_custom_call.1} parent=1 // pred_fallthru
      _
    // Predicated region
    $region10: #{tpu_custom_call.1} parent=1 // pred_check
      _
    $region11: #{tpu_custom_call.1} parent=1 // pred_check_branch
      %19 = sbr.rel (0) target = $region13
    $region12: #{tpu_custom_call.1} parent=1 // pred_region
      _
    $region13: #{tpu_custom_call.1} parent=1 // pred_fallthru
      _
    // Predicated region
    $region14: #{tpu_custom_call.1} parent=1 // pred_check
      _
    $region15: #{tpu_custom_call.1} parent=1 // pred_check_branch
      %21 = sbr.rel (0) target = $region17
    $region16: #{tpu_custom_call.1} parent=1 // pred_region
      %s23 = ssub.s32 9600, 9600
      %24 = vsyncadd [#allocation3], %s23
      %s25 = sshll.u32 [#allocation2], 4
      %s26 = int_to_ptr.vmem [resolvable:$true] %s25
      %31 = dma.hbm_to_vmem [thread:$0]  %s3, 9600, %s26, [#allocation3], 192, 192, 12
    $region17: #{tpu_custom_call.1} parent=1 // pred_fallthru
      _
    // Predicated region
    $region18: #{tpu_custom_call.1} parent=1 // pred_check
      _
    $region19: #{tpu_custom_call.1} parent=1 // pred_check_branch
      %33 = sbr.rel (0) target = $region21
    $region20: #{tpu_custom_call.1} parent=1 // pred_region
      _
    $region21: #{tpu_custom_call.1} parent=1 // pred_fallthru
      _
    // Predicated region
    $region22: #{tpu_custom_call.1} parent=1 // pred_check
      _
    $region23: #{tpu_custom_call.1} parent=1 // pred_check_branch
      %35 = sbr.rel (0) target = $region25
    $region24: #{tpu_custom_call.1} parent=1 // pred_region
      _
    $region25: #{tpu_custom_call.1} parent=1 // pred_fallthru
      _
    // Predicated region
    $region26: #{tpu_custom_call.1} parent=1 // pred_check
      _
    $region27: #{tpu_custom_call.1} parent=1 // pred_check_branch
      %37 = sbr.rel (0) target = $region29
    $region28: #{tpu_custom_call.1} parent=1 // pred_region
      _
    $region29: #{tpu_custom_call.1} parent=1 // pred_fallthru
      _
    // Predicated region
    $region30: #{tpu_custom_call.1} parent=1 // pred_check
      _
    $region31: #{tpu_custom_call.1} parent=1 // pred_check_branch
      %39 = sbr.rel (0) target = $region33
    $region32: #{tpu_custom_call.1} parent=1 // pred_region
      %40 = dma.done [#allocation3], 9600
    $region33: #{tpu_custom_call.1} parent=1 // pred_fallthru
      _
    %v42 = vld [vmem:[%s0] sm:$0xff]
    %v43 = vld [vmem:[%s0 + $0x8] sm:$0xff]
    %v44 = vld [vmem:[%s0 + $0x10] sm:$0xff]
    %v45 = vld [vmem:[%s0 + $0x18] sm:$0xff]
    %v46 = vld [vmem:[%s0 + $0x20] sm:$0xff]
    %v47 = vld [vmem:[%s0 + $0x28] sm:$0xff]
    %v48 = vld [vmem:[%s0 + $0x30] sm:$0xff]
    %v49 = vld [vmem:[%s0 + $0x38] sm:$0xff]
    %v50 = vld [vmem:[%s0 + $0x40] sm:$0xff]
    %v51 = vld [vmem:[%s0 + $0x48] sm:$0xff]
    %v52 = vld [vmem:[%s0 + $0x50] sm:$0xff]
    %v53 = vld [vmem:[%s0 + $0x58] sm:$0xff]
    %v54 = vld [vmem:[%s0 + $0x60] sm:$0xff]
    %v55 = vld [vmem:[%s0 + $0x68] sm:$0xff]
    %v56 = vld [vmem:[%s0 + $0x70] sm:$0xff]
    %v57 = vld [vmem:[%s0 + $0x78] sm:$0xff]
    %v58 = vld [vmem:[%s0 + $0x80] sm:$0xff]
    %v59 = vld [vmem:[%s0 + $0x88] sm:$0xff]
    %v60 = vld [vmem:[%s0 + $0x90] sm:$0xff]
    %v61 = vld [vmem:[%s0 + $0x98] sm:$0xff]
    %v62 = vld [vmem:[%s0 + $0xa0] sm:$0xff]
    %v63 = vld [vmem:[%s0 + $0xa8] sm:$0xff]
    %v64 = vld [vmem:[%s0 + $0xb0] sm:$0xff]
    %v65 = vld [vmem:[%s0 + $0xb8] sm:$0xff]
    %v66 = vld [vmem:[%s0 + $0xc0] sm:$0xff]
    %v67 = vld [vmem:[%s0 + $0xc8] sm:$0xff]
    %v68 = vld [vmem:[%s0 + $0xd0] sm:$0xff]
    %v69 = vld [vmem:[%s0 + $0xd8] sm:$0xff]
    %v70 = vld [vmem:[%s0 + $0xe0] sm:$0xff]
    %v71 = vld [vmem:[%s0 + $0xe8] sm:$0xff]
    %v72 = vld [vmem:[%s0 + $0xf0] sm:$0xff]
    %v73 = vld [vmem:[%s0 + $0xf8] sm:$0xff]
    %v74 = vpack.c.bf16 %v43, %v42
    %v75 = vpack.c.bf16 %v45, %v44
    %v76 = vpack.c.bf16 %v47, %v46
    %v77 = vpack.c.bf16 %v49, %v48
    %v78 = vpack.c.bf16 %v51, %v50
    %v79 = vpack.c.bf16 %v53, %v52
    %v80 = vpack.c.bf16 %v55, %v54
    %v81 = vpack.c.bf16 %v57, %v56
    %v82 = vpack.c.bf16 %v59, %v58
    %v83 = vpack.c.bf16 %v61, %v60
    %v84 = vpack.c.bf16 %v63, %v62
    %v85 = vpack.c.bf16 %v65, %v64
    %v86 = vpack.c.bf16 %v67, %v66
    %v87 = vpack.c.bf16 %v69, %v68
    %v88 = vpack.c.bf16 %v71, %v70
    %v89 = vpack.c.bf16 %v73, %v72
    %v90 = vld [vmem:[%s1] sm:$0xff]
    %v91 = vld [vmem:[%s1 + $0x8] sm:$0xff]
    %v92 = vld [vmem:[%s1 + $0x10] sm:$0xff]
    %v93 = vld [vmem:[%s1 + $0x18] sm:$0xff]
    %v94 = vld [vmem:[%s1 + $0x20] sm:$0xff]
    %v95 = vld [vmem:[%s1 + $0x28] sm:$0xff]
    %v96 = vld [vmem:[%s1 + $0x30] sm:$0x33]
    %v97 = vld [vmem:[%s1 + $0x38] sm:$0x33]
    %v98 = vld [vmem:[%s2] sm:$0xf]
    %v100 = vlaneseq
    %v101 = vshrl.u32 %v100, 7
    %v102 = vsub.s32 0, %v101
    %v103 = vrot.slane %v98, %v102
    %v104 = vlaneseq
    %v105 = vshrl.u32 %v104, 7
    %v106 = vsub.s32 1, %v105
    %v107 = vrot.slane %v98, %v106
    %v108 = vlaneseq
    %v109 = vshrl.u32 %v108, 7
    %v110 = vsub.s32 2, %v109
    %v111 = vrot.slane %v98, %v110
    %v112 = vlaneseq
    %v113 = vshrl.u32 %v112, 7
    %v114 = vsub.s32 3, %v113
    %v115 = vrot.slane %v98, %v114
    %v128 = vunpack.c.l.b16 %v90
    %v129 = vunpack.c.h.b16 %v90
    %v130 = vunpack.c.l.b16 %v91
    %v131 = vunpack.c.h.b16 %v91
    %v132 = vunpack.c.l.b16 %v92
    %v133 = vunpack.c.h.b16 %v92
    %v134 = vunpack.c.l.b16 %v93
    %v135 = vunpack.c.h.b16 %v93
    %v136 = vunpack.c.l.b16 %v94
    %v137 = vunpack.c.h.b16 %v94
    %v138 = vunpack.c.l.b16 %v95
    %v139 = vunpack.c.h.b16 %v95
    %v140 = vunpack.c.l.b16 %v96
    %v141 = vunpack.c.h.b16 %v96
    %v142 = vunpack.c.l.b16 %v97
    %v143 = vunpack.c.h.b16 %v97
    %v144 = vpack.c.b16 %v132, %v128
    %v145 = vpack.c.b16 %v133, %v129
    %v146 = vpack.c.b16 %v134, %v130
    %v147 = vpack.c.b16 %v135, %v131
    %v148 = vpack.c.b16 %v140, %v136
    %v149 = vpack.c.b16 %v141, %v137
    %v150 = vpack.c.b16 %v142, %v138
    %v151 = vpack.c.b16 %v143, %v139
    %vm156 = vcmask 220160
    %v158 = vsel %vm156, %v74, 0
    %v161 = vsel %vm156, %v75, 0
    %v164 = vsel %vm156, %v76, 0
    %v167 = vsel %vm156, %v77, 0
    %v170 = vsel %vm156, %v78, 0
    %v173 = vsel %vm156, %v79, 0
    %v176 = vsel %vm156, %v80, 0
    %v179 = vsel %vm156, %v81, 0
    %v182 = vsel %vm156, %v82, 0
    %v185 = vsel %vm156, %v83, 0
    %v188 = vsel %vm156, %v84, 0
    %v191 = vsel %vm156, %v85, 0
    %v194 = vsel %vm156, %v86, 0
    %v197 = vsel %vm156, %v87, 0
    %v200 = vsel %vm156, %v88, 0
    %v203 = vsel %vm156, %v89, 0
    %vm205 = vcmask 1044480
    %vm206 = vcmask 1045504
    %v207 = vsel %vm205, 4294967295, 65535
    %v208 = vsel %vm206, %v207, 0
    %v210 = vand.u32 %v148, %v208
    %v213 = vand.u32 %v149, %v208
    %v216 = vand.u32 %v150, %v208
    %v219 = vand.u32 %v151, %v208
    %221 = vmatprep.subr.bf16.mxu0 0
    %222 = vmatpush1.bf16.msra.mxu0 0
    %223 = vmatprep.subr.bf16.mxu0 0
    %224 = vmatpush1.bf16.msra.mxu0 0
    %225 = vmatprep.subr.bf16.mxu0 0
    %226 = vmatpush1.bf16.msra.mxu0 0
    %227 = vmatprep.subr.bf16.mxu0 0
    %228 = vmatpush1.bf16.msra.mxu0 0
    %229 = vmatprep.subr.bf16.mxu0 0
    %230 = vmatpush1.bf16.msra.mxu0 0
    %231 = vmatprep.subr.bf16.mxu0 0
    %232 = vmatpush1.bf16.msra.mxu0 0
    %233 = vmatprep.subr.bf16.mxu0 %v213
    %234 = vmatpush1.bf16.msra.mxu0 %v210
    %235 = vmatprep.subr.bf16.mxu0 %v145
    %236 = vmatpush1.bf16.msra.mxu0 %v144
    %237 = vmatprep.subr.bf16.mxu0 0
    %238 = vmatpush2.bf16.msra.mxu0 0
    %239 = vmatprep.subr.bf16.mxu0 0
    %240 = vmatpush2.bf16.msra.mxu0 0
    %241 = vmatprep.subr.bf16.mxu0 0
    %242 = vmatpush2.bf16.msra.mxu0 0
    %243 = vmatprep.subr.bf16.mxu0 0
    %244 = vmatpush2.bf16.msra.mxu0 0
    %245 = vmatprep.subr.bf16.mxu0 0
    %246 = vmatpush2.bf16.msra.mxu0 0
    %247 = vmatprep.subr.bf16.mxu0 0
    %248 = vmatpush2.bf16.msra.mxu0 0
    %249 = vmatprep.subr.bf16.mxu0 0
    %250 = vmatpush2.bf16.msra.mxu0 0
    %251 = vmatprep.subr.bf16.mxu0 0
    %252 = vmatpush2.bf16.msra.mxu0 0
    %253 = vmatprep.mubr.bf16.mxu0 0
    %254 = vmatmul.mubr.bf16.gmra.mxu0 %v158
    %v255 = vpop.f32.mrf.mxu0
    %v256 = vadd.f32 %v103, %v255
    %v257 = vpop.f32.mrf.mxu0
    %v258 = vadd.f32 %v107, %v257
    %v259 = vpop.f32.mrf.mxu0
    %v260 = vadd.f32 %v103, %v259
    %v261 = vpop.f32.mrf.mxu0
    %v262 = vadd.f32 %v107, %v261
    %263 = vmatprep.mubr.bf16.mxu0 0
    %264 = vmatmul.mubr.bf16.gmra.mxu0 %v161
    %v265 = vpop.f32.mrf.mxu0
    %v266 = vadd.f32 %v103, %v265
    %v267 = vpop.f32.mrf.mxu0
    %v268 = vadd.f32 %v107, %v267
    %v269 = vpop.f32.mrf.mxu0
    %v270 = vadd.f32 %v103, %v269
    %v271 = vpop.f32.mrf.mxu0
    %v272 = vadd.f32 %v107, %v271
    %273 = vmatprep.mubr.bf16.mxu0 0
    %274 = vmatmul.mubr.bf16.gmra.mxu0 %v164
    %v275 = vpop.f32.mrf.mxu0
    %v276 = vadd.f32 %v103, %v275
    %v277 = vpop.f32.mrf.mxu0
    %v278 = vadd.f32 %v107, %v277
    %v279 = vpop.f32.mrf.mxu0
    %v280 = vadd.f32 %v103, %v279
    %v281 = vpop.f32.mrf.mxu0
    %v282 = vadd.f32 %v107, %v281
    %283 = vmatprep.mubr.bf16.mxu0 0
    %284 = vmatmul.mubr.bf16.gmra.mxu0 %v167
    %v285 = vpop.f32.mrf.mxu0
    %v286 = vadd.f32 %v103, %v285
    %v287 = vpop.f32.mrf.mxu0
    %v288 = vadd.f32 %v107, %v287
    %v289 = vpop.f32.mrf.mxu0
    %v290 = vadd.f32 %v103, %v289
    %v291 = vpop.f32.mrf.mxu0
    %v292 = vadd.f32 %v107, %v291
    %293 = vmatprep.mubr.bf16.mxu0 0
    %294 = vmatmul.mubr.bf16.gmra.mxu0 %v170
    %v295 = vpop.f32.mrf.mxu0
    %v296 = vadd.f32 %v103, %v295
    %v297 = vpop.f32.mrf.mxu0
    %v298 = vadd.f32 %v107, %v297
    %v299 = vpop.f32.mrf.mxu0
    %v300 = vadd.f32 %v103, %v299
    %v301 = vpop.f32.mrf.mxu0
    %v302 = vadd.f32 %v107, %v301
    %303 = vmatprep.mubr.bf16.mxu0 0
    %304 = vmatmul.mubr.bf16.gmra.mxu0 %v173
    %v305 = vpop.f32.mrf.mxu0
    %v306 = vadd.f32 %v103, %v305
    %v307 = vpop.f32.mrf.mxu0
    %v308 = vadd.f32 %v107, %v307
    %v309 = vpop.f32.mrf.mxu0
    %v310 = vadd.f32 %v103, %v309
    %v311 = vpop.f32.mrf.mxu0
    %v312 = vadd.f32 %v107, %v311
    %313 = vmatprep.mubr.bf16.mxu0 0
    %314 = vmatmul.mubr.bf16.gmra.mxu0 %v176
    %v315 = vpop.f32.mrf.mxu0
    %v316 = vadd.f32 %v103, %v315
    %v317 = vpop.f32.mrf.mxu0
    %v318 = vadd.f32 %v107, %v317
    %v319 = vpop.f32.mrf.mxu0
    %v320 = vadd.f32 %v103, %v319
    %v321 = vpop.f32.mrf.mxu0
    %v322 = vadd.f32 %v107, %v321
    %323 = vmatprep.mubr.bf16.mxu0 0
    %324 = vmatmul.mubr.bf16.gmra.mxu0 %v179
    %v325 = vpop.f32.mrf.mxu0
    %v326 = vadd.f32 %v103, %v325
    %v327 = vpop.f32.mrf.mxu0
    %v328 = vadd.f32 %v107, %v327
    %v329 = vpop.f32.mrf.mxu0
    %v330 = vadd.f32 %v103, %v329
    %v331 = vpop.f32.mrf.mxu0
    %v332 = vadd.f32 %v107, %v331
    %333 = vmatprep.mubr.bf16.mxu0 0
    %334 = vmatmul.mubr.bf16.gmra.mxu0 %v182
    %v335 = vpop.f32.mrf.mxu0
    %v336 = vadd.f32 %v103, %v335
    %v337 = vpop.f32.mrf.mxu0
    %v338 = vadd.f32 %v107, %v337
    %v339 = vpop.f32.mrf.mxu0
    %v340 = vadd.f32 %v103, %v339
    %v341 = vpop.f32.mrf.mxu0
    %v342 = vadd.f32 %v107, %v341
    %343 = vmatprep.mubr.bf16.mxu0 0
    %344 = vmatmul.mubr.bf16.gmra.mxu0 %v185
    %v345 = vpop.f32.mrf.mxu0
    %v346 = vadd.f32 %v103, %v345
    %v347 = vpop.f32.mrf.mxu0
    %v348 = vadd.f32 %v107, %v347
    %v349 = vpop.f32.mrf.mxu0
    %v350 = vadd.f32 %v103, %v349
    %v351 = vpop.f32.mrf.mxu0
    %v352 = vadd.f32 %v107, %v351
    %353 = vmatprep.mubr.bf16.mxu0 0
    %354 = vmatmul.mubr.bf16.gmra.mxu0 %v188
    %v355 = vpop.f32.mrf.mxu0
    %v356 = vadd.f32 %v103, %v355
    %v357 = vpop.f32.mrf.mxu0
    %v358 = vadd.f32 %v107, %v357
    %v359 = vpop.f32.mrf.mxu0
    %v360 = vadd.f32 %v103, %v359
    %v361 = vpop.f32.mrf.mxu0
    %v362 = vadd.f32 %v107, %v361
    %363 = vmatprep.mubr.bf16.mxu0 0
    %364 = vmatmul.mubr.bf16.gmra.mxu0 %v191
    %v365 = vpop.f32.mrf.mxu0
    %v366 = vadd.f32 %v103, %v365
    %v367 = vpop.f32.mrf.mxu0
    %v368 = vadd.f32 %v107, %v367
    %v369 = vpop.f32.mrf.mxu0
    %v370 = vadd.f32 %v103, %v369
    %v371 = vpop.f32.mrf.mxu0
    %v372 = vadd.f32 %v107, %v371
    %373 = vmatprep.mubr.bf16.mxu0 0
    %374 = vmatmul.mubr.bf16.gmra.mxu0 %v194
    %v375 = vpop.f32.mrf.mxu0
    %v376 = vadd.f32 %v103, %v375
    %v377 = vpop.f32.mrf.mxu0
    %v378 = vadd.f32 %v107, %v377
    %v379 = vpop.f32.mrf.mxu0
    %v380 = vadd.f32 %v103, %v379
    %v381 = vpop.f32.mrf.mxu0
    %v382 = vadd.f32 %v107, %v381
    %383 = vmatprep.mubr.bf16.mxu0 0
    %384 = vmatmul.mubr.bf16.gmra.mxu0 %v197
    %v385 = vpop.f32.mrf.mxu0
    %v386 = vadd.f32 %v103, %v385
    %v387 = vpop.f32.mrf.mxu0
    %v388 = vadd.f32 %v107, %v387
    %v389 = vpop.f32.mrf.mxu0
    %v390 = vadd.f32 %v103, %v389
    %v391 = vpop.f32.mrf.mxu0
    %v392 = vadd.f32 %v107, %v391
    %393 = vmatprep.mubr.bf16.mxu0 0
    %394 = vmatmul.mubr.bf16.gmra.mxu0 %v200
    %v395 = vpop.f32.mrf.mxu0
    %v396 = vadd.f32 %v103, %v395
    %v397 = vpop.f32.mrf.mxu0
    %v398 = vadd.f32 %v107, %v397
    %v399 = vpop.f32.mrf.mxu0
    %v400 = vadd.f32 %v103, %v399
    %v401 = vpop.f32.mrf.mxu0
    %v402 = vadd.f32 %v107, %v401
    %403 = vmatprep.mubr.bf16.mxu0 0
    %404 = vmatmul.mubr.bf16.gmra.mxu0 %v203
    %v405 = vpop.f32.mrf.mxu0
    %v406 = vadd.f32 %v103, %v405
    %v407 = vpop.f32.mrf.mxu0
    %v408 = vadd.f32 %v107, %v407
    %v409 = vpop.f32.mrf.mxu0
    %v410 = vadd.f32 %v103, %v409
    %v411 = vpop.f32.mrf.mxu0
    %v412 = vadd.f32 %v107, %v411
    %413 = vdwg.mxu0
    %414 = vmatprep.subr.bf16.mxu0 0
    %415 = vmatpush1.bf16.msra.mxu0 0
    %416 = vmatprep.subr.bf16.mxu0 0
    %417 = vmatpush1.bf16.msra.mxu0 0
    %418 = vmatprep.subr.bf16.mxu0 0
    %419 = vmatpush1.bf16.msra.mxu0 0
    %420 = vmatprep.subr.bf16.mxu0 0
    %421 = vmatpush1.bf16.msra.mxu0 0
    %422 = vmatprep.subr.bf16.mxu0 0
    %423 = vmatpush1.bf16.msra.mxu0 0
    %424 = vmatprep.subr.bf16.mxu0 0
    %425 = vmatpush1.bf16.msra.mxu0 0
    %426 = vmatprep.subr.bf16.mxu0 %v219
    %427 = vmatpush1.bf16.msra.mxu0 %v216
    %428 = vmatprep.subr.bf16.mxu0 %v147
    %429 = vmatpush1.bf16.msra.mxu0 %v146
    %430 = vmatprep.subr.bf16.mxu0 0
    %431 = vmatpush2.bf16.msra.mxu0 0
    %432 = vmatprep.subr.bf16.mxu0 0
    %433 = vmatpush2.bf16.msra.mxu0 0
    %434 = vmatprep.subr.bf16.mxu0 0
    %435 = vmatpush2.bf16.msra.mxu0 0
    %436 = vmatprep.subr.bf16.mxu0 0
    %437 = vmatpush2.bf16.msra.mxu0 0
    %438 = vmatprep.subr.bf16.mxu0 0
    %439 = vmatpush2.bf16.msra.mxu0 0
    %440 = vmatprep.subr.bf16.mxu0 0
    %441 = vmatpush2.bf16.msra.mxu0 0
    %442 = vmatprep.subr.bf16.mxu0 0
    %443 = vmatpush2.bf16.msra.mxu0 0
    %444 = vmatprep.subr.bf16.mxu0 0
    %445 = vmatpush2.bf16.msra.mxu0 0
    %446 = vmatprep.mubr.bf16.mxu0 0
    %447 = vmatmul.mubr.bf16.gmra.mxu0 %v158
    %v448 = vpop.f32.mrf.mxu0
    %v449 = vadd.f32 %v111, %v448
    %v450 = vpop.f32.mrf.mxu0
    %v451 = vadd.f32 %v115, %v450
    %v452 = vpop.f32.mrf.mxu0
    %v453 = vadd.f32 %v111, %v452
    %v454 = vpop.f32.mrf.mxu0
    %v455 = vadd.f32 %v115, %v454
    %456 = vmatprep.mubr.bf16.mxu0 0
    %457 = vmatmul.mubr.bf16.gmra.mxu0 %v161
    %v458 = vpop.f32.mrf.mxu0
    %v459 = vadd.f32 %v111, %v458
    %v460 = vpop.f32.mrf.mxu0
    %v461 = vadd.f32 %v115, %v460
    %v462 = vpop.f32.mrf.mxu0
    %v463 = vadd.f32 %v111, %v462
    %v464 = vpop.f32.mrf.mxu0
    %v465 = vadd.f32 %v115, %v464
    %466 = vmatprep.mubr.bf16.mxu0 0
    %467 = vmatmul.mubr.bf16.gmra.mxu0 %v164
    %v468 = vpop.f32.mrf.mxu0
    %v469 = vadd.f32 %v111, %v468
    %v470 = vpop.f32.mrf.mxu0
    %v471 = vadd.f32 %v115, %v470
    %v472 = vpop.f32.mrf.mxu0
    %v473 = vadd.f32 %v111, %v472
    %v474 = vpop.f32.mrf.mxu0
    %v475 = vadd.f32 %v115, %v474
    %476 = vmatprep.mubr.bf16.mxu0 0
    %477 = vmatmul.mubr.bf16.gmra.mxu0 %v167
    %v478 = vpop.f32.mrf.mxu0
    %v479 = vadd.f32 %v111, %v478
    %v480 = vpop.f32.mrf.mxu0
    %v481 = vadd.f32 %v115, %v480
    %v482 = vpop.f32.mrf.mxu0
    %v483 = vadd.f32 %v111, %v482
    %v484 = vpop.f32.mrf.mxu0
    %v485 = vadd.f32 %v115, %v484
    %486 = vmatprep.mubr.bf16.mxu0 0
    %487 = vmatmul.mubr.bf16.gmra.mxu0 %v170
    %v488 = vpop.f32.mrf.mxu0
    %v489 = vadd.f32 %v111, %v488
    %v490 = vpop.f32.mrf.mxu0
    %v491 = vadd.f32 %v115, %v490
    %v492 = vpop.f32.mrf.mxu0
    %v493 = vadd.f32 %v111, %v492
    %v494 = vpop.f32.mrf.mxu0
    %v495 = vadd.f32 %v115, %v494
    %496 = vmatprep.mubr.bf16.mxu0 0
    %497 = vmatmul.mubr.bf16.gmra.mxu0 %v173
    %v498 = vpop.f32.mrf.mxu0
    %v499 = vadd.f32 %v111, %v498
    %v500 = vpop.f32.mrf.mxu0
    %v501 = vadd.f32 %v115, %v500
    %v502 = vpop.f32.mrf.mxu0
    %v503 = vadd.f32 %v111, %v502
    %v504 = vpop.f32.mrf.mxu0
    %v505 = vadd.f32 %v115, %v504
    %506 = vmatprep.mubr.bf16.mxu0 0
    %507 = vmatmul.mubr.bf16.gmra.mxu0 %v176
    %v508 = vpop.f32.mrf.mxu0
    %v509 = vadd.f32 %v111, %v508
    %v510 = vpop.f32.mrf.mxu0
    %v511 = vadd.f32 %v115, %v510
    %v512 = vpop.f32.mrf.mxu0
    %v513 = vadd.f32 %v111, %v512
    %v514 = vpop.f32.mrf.mxu0
    %v515 = vadd.f32 %v115, %v514
    %516 = vmatprep.mubr.bf16.mxu0 0
    %517 = vmatmul.mubr.bf16.gmra.mxu0 %v179
    %v518 = vpop.f32.mrf.mxu0
    %v519 = vadd.f32 %v111, %v518
    %v520 = vpop.f32.mrf.mxu0
    %v521 = vadd.f32 %v115, %v520
    %v522 = vpop.f32.mrf.mxu0
    %v523 = vadd.f32 %v111, %v522
    %v524 = vpop.f32.mrf.mxu0
    %v525 = vadd.f32 %v115, %v524
    %526 = vmatprep.mubr.bf16.mxu0 0
    %527 = vmatmul.mubr.bf16.gmra.mxu0 %v182
    %v528 = vpop.f32.mrf.mxu0
    %v529 = vadd.f32 %v111, %v528
    %v530 = vpop.f32.mrf.mxu0
    %v531 = vadd.f32 %v115, %v530
    %v532 = vpop.f32.mrf.mxu0
    %v533 = vadd.f32 %v111, %v532
    %v534 = vpop.f32.mrf.mxu0
    %v535 = vadd.f32 %v115, %v534
    %536 = vmatprep.mubr.bf16.mxu0 0
    %537 = vmatmul.mubr.bf16.gmra.mxu0 %v185
    %v538 = vpop.f32.mrf.mxu0
    %v539 = vadd.f32 %v111, %v538
    %v540 = vpop.f32.mrf.mxu0
    %v541 = vadd.f32 %v115, %v540
    %v542 = vpop.f32.mrf.mxu0
    %v543 = vadd.f32 %v111, %v542
    %v544 = vpop.f32.mrf.mxu0
    %v545 = vadd.f32 %v115, %v544
    %546 = vmatprep.mubr.bf16.mxu0 0
    %547 = vmatmul.mubr.bf16.gmra.mxu0 %v188
    %v548 = vpop.f32.mrf.mxu0
    %v549 = vadd.f32 %v111, %v548
    %v550 = vpop.f32.mrf.mxu0
    %v551 = vadd.f32 %v115, %v550
    %v552 = vpop.f32.mrf.mxu0
    %v553 = vadd.f32 %v111, %v552
    %v554 = vpop.f32.mrf.mxu0
    %v555 = vadd.f32 %v115, %v554
    %556 = vmatprep.mubr.bf16.mxu0 0
    %557 = vmatmul.mubr.bf16.gmra.mxu0 %v191
    %v558 = vpop.f32.mrf.mxu0
    %v559 = vadd.f32 %v111, %v558
    %v560 = vpop.f32.mrf.mxu0
    %v561 = vadd.f32 %v115, %v560
    %v562 = vpop.f32.mrf.mxu0
    %v563 = vadd.f32 %v111, %v562
    %v564 = vpop.f32.mrf.mxu0
    %v565 = vadd.f32 %v115, %v564
    %566 = vmatprep.mubr.bf16.mxu0 0
    %567 = vmatmul.mubr.bf16.gmra.mxu0 %v194
    %v568 = vpop.f32.mrf.mxu0
    %v569 = vadd.f32 %v111, %v568
    %v570 = vpop.f32.mrf.mxu0
    %v571 = vadd.f32 %v115, %v570
    %v572 = vpop.f32.mrf.mxu0
    %v573 = vadd.f32 %v111, %v572
    %v574 = vpop.f32.mrf.mxu0
    %v575 = vadd.f32 %v115, %v574
    %576 = vmatprep.mubr.bf16.mxu0 0
    %577 = vmatmul.mubr.bf16.gmra.mxu0 %v197
    %v578 = vpop.f32.mrf.mxu0
    %v579 = vadd.f32 %v111, %v578
    %v580 = vpop.f32.mrf.mxu0
    %v581 = vadd.f32 %v115, %v580
    %v582 = vpop.f32.mrf.mxu0
    %v583 = vadd.f32 %v111, %v582
    %v584 = vpop.f32.mrf.mxu0
    %v585 = vadd.f32 %v115, %v584
    %586 = vmatprep.mubr.bf16.mxu0 0
    %587 = vmatmul.mubr.bf16.gmra.mxu0 %v200
    %v588 = vpop.f32.mrf.mxu0
    %v589 = vadd.f32 %v111, %v588
    %v590 = vpop.f32.mrf.mxu0
    %v591 = vadd.f32 %v115, %v590
    %v592 = vpop.f32.mrf.mxu0
    %v593 = vadd.f32 %v111, %v592
    %v594 = vpop.f32.mrf.mxu0
    %v595 = vadd.f32 %v115, %v594
    %596 = vmatprep.mubr.bf16.mxu0 0
    %597 = vmatmul.mubr.bf16.gmra.mxu0 %v203
    %v598 = vpop.f32.mrf.mxu0
    %v599 = vadd.f32 %v111, %v598
    %v600 = vpop.f32.mrf.mxu0
    %v601 = vadd.f32 %v115, %v600
    %v602 = vpop.f32.mrf.mxu0
    %v603 = vadd.f32 %v111, %v602
    %v604 = vpop.f32.mrf.mxu0
    %v605 = vadd.f32 %v115, %v604
    %606 = vdwg.mxu0
    %v607 = vmax.f32 %v256, 0.0
    %v608 = vmax.f32 %v258, 0.0
    %v609 = vmax.f32 %v449, 0.0
    %v610 = vmax.f32 %v451, 0.0
    %v611 = vmax.f32 %v260, 0.0
    %v612 = vmax.f32 %v262, 0.0
    %v613 = vmax.f32 %v453, 0.0
    %v614 = vmax.f32 %v455, 0.0
    %v615 = vmax.f32 %v266, 0.0
    %v616 = vmax.f32 %v268, 0.0
    %v617 = vmax.f32 %v459, 0.0
    %v618 = vmax.f32 %v461, 0.0
    %v619 = vmax.f32 %v270, 0.0
    %v620 = vmax.f32 %v272, 0.0
    %v621 = vmax.f32 %v463, 0.0
    %v622 = vmax.f32 %v465, 0.0
    %v623 = vmax.f32 %v276, 0.0
    %v624 = vmax.f32 %v278, 0.0
    %v625 = vmax.f32 %v469, 0.0
    %v626 = vmax.f32 %v471, 0.0
    %v627 = vmax.f32 %v280, 0.0
    %v628 = vmax.f32 %v282, 0.0
    %v629 = vmax.f32 %v473, 0.0
    %v630 = vmax.f32 %v475, 0.0
    %v631 = vmax.f32 %v286, 0.0
    %v632 = vmax.f32 %v288, 0.0
    %v633 = vmax.f32 %v479, 0.0
    %v634 = vmax.f32 %v481, 0.0
    %v635 = vmax.f32 %v290, 0.0
    %v636 = vmax.f32 %v292, 0.0
    %v637 = vmax.f32 %v483, 0.0
    %v638 = vmax.f32 %v485, 0.0
    %v639 = vmax.f32 %v296, 0.0
    %v640 = vmax.f32 %v298, 0.0
    %v641 = vmax.f32 %v489, 0.0
    %v642 = vmax.f32 %v491, 0.0
    %v643 = vmax.f32 %v300, 0.0
    %v644 = vmax.f32 %v302, 0.0
    %v645 = vmax.f32 %v493, 0.0
    %v646 = vmax.f32 %v495, 0.0
    %v647 = vmax.f32 %v306, 0.0
    %v648 = vmax.f32 %v308, 0.0
    %v649 = vmax.f32 %v499, 0.0
    %v650 = vmax.f32 %v501, 0.0
    %v651 = vmax.f32 %v310, 0.0
    %v652 = vmax.f32 %v312, 0.0
    %v653 = vmax.f32 %v503, 0.0
    %v654 = vmax.f32 %v505, 0.0
    %v655 = vmax.f32 %v316, 0.0
    %v656 = vmax.f32 %v318, 0.0
    %v657 = vmax.f32 %v509, 0.0
    %v658 = vmax.f32 %v511, 0.0
    %v659 = vmax.f32 %v320, 0.0
    %v660 = vmax.f32 %v322, 0.0
    %v661 = vmax.f32 %v513, 0.0
    %v662 = vmax.f32 %v515, 0.0
    %v663 = vmax.f32 %v326, 0.0
    %v664 = vmax.f32 %v328, 0.0
    %v665 = vmax.f32 %v519, 0.0
    %v666 = vmax.f32 %v521, 0.0
    %v667 = vmax.f32 %v330, 0.0
    %v668 = vmax.f32 %v332, 0.0
    %v669 = vmax.f32 %v523, 0.0
    %v670 = vmax.f32 %v525, 0.0
    %v671 = vmax.f32 %v336, 0.0
    %v672 = vmax.f32 %v338, 0.0
    %v673 = vmax.f32 %v529, 0.0
    %v674 = vmax.f32 %v531, 0.0
    %v675 = vmax.f32 %v340, 0.0
    %v676 = vmax.f32 %v342, 0.0
    %v677 = vmax.f32 %v533, 0.0
    %v678 = vmax.f32 %v535, 0.0
    %v679 = vmax.f32 %v346, 0.0
    %v680 = vmax.f32 %v348, 0.0
    %v681 = vmax.f32 %v539, 0.0
    %v682 = vmax.f32 %v541, 0.0
    %v683 = vmax.f32 %v350, 0.0
    %v684 = vmax.f32 %v352, 0.0
    %v685 = vmax.f32 %v543, 0.0
    %v686 = vmax.f32 %v545, 0.0
    %v687 = vmax.f32 %v356, 0.0
    %v688 = vmax.f32 %v358, 0.0
    %v689 = vmax.f32 %v549, 0.0
    %v690 = vmax.f32 %v551, 0.0
    %v691 = vmax.f32 %v360, 0.0
    %v692 = vmax.f32 %v362, 0.0
    %v693 = vmax.f32 %v553, 0.0
    %v694 = vmax.f32 %v555, 0.0
    %v695 = vmax.f32 %v366, 0.0
    %v696 = vmax.f32 %v368, 0.0
    %v697 = vmax.f32 %v559, 0.0
    %v698 = vmax.f32 %v561, 0.0
    %v699 = vmax.f32 %v370, 0.0
    %v700 = vmax.f32 %v372, 0.0
    %v701 = vmax.f32 %v563, 0.0
    %v702 = vmax.f32 %v565, 0.0
    %v703 = vmax.f32 %v376, 0.0
    %v704 = vmax.f32 %v378, 0.0
    %v705 = vmax.f32 %v569, 0.0
    %v706 = vmax.f32 %v571, 0.0
    %v707 = vmax.f32 %v380, 0.0
    %v708 = vmax.f32 %v382, 0.0
    %v709 = vmax.f32 %v573, 0.0
    %v710 = vmax.f32 %v575, 0.0
    %v711 = vmax.f32 %v386, 0.0
    %v712 = vmax.f32 %v388, 0.0
    %v713 = vmax.f32 %v579, 0.0
    %v714 = vmax.f32 %v581, 0.0
    %v715 = vmax.f32 %v390, 0.0
    %v716 = vmax.f32 %v392, 0.0
    %v717 = vmax.f32 %v583, 0.0
    %v718 = vmax.f32 %v585, 0.0
    %v719 = vmax.f32 %v396, 0.0
    %v720 = vmax.f32 %v398, 0.0
    %v721 = vmax.f32 %v589, 0.0
    %v722 = vmax.f32 %v591, 0.0
    %v723 = vmax.f32 %v400, 0.0
    %v724 = vmax.f32 %v402, 0.0
    %v725 = vmax.f32 %v593, 0.0
    %v726 = vmax.f32 %v595, 0.0
    %v727 = vmax.f32 %v406, 0.0
    %v728 = vmax.f32 %v408, 0.0
    %v729 = vmax.f32 %v599, 0.0
    %v730 = vmax.f32 %v601, 0.0
    %v731 = vmax.f32 %v410, 0.0
    %v732 = vmax.f32 %v412, 0.0
    %v733 = vmax.f32 %v603, 0.0
    %v734 = vmax.f32 %v605, 0.0
    %v735 = vpack.c.bf16 %v611, %v607
    %v736 = vpack.c.bf16 %v612, %v608
    %v737 = vpack.c.bf16 %v613, %v609
    %v738 = vpack.c.bf16 %v614, %v610
    %v739 = vpack.c.bf16 %v619, %v615
    %v740 = vpack.c.bf16 %v620, %v616
    %v741 = vpack.c.bf16 %v621, %v617
    %v742 = vpack.c.bf16 %v622, %v618
    %v743 = vpack.c.bf16 %v627, %v623
    %v744 = vpack.c.bf16 %v628, %v624
    %v745 = vpack.c.bf16 %v629, %v625
    %v746 = vpack.c.bf16 %v630, %v626
    %v747 = vpack.c.bf16 %v635, %v631
    %v748 = vpack.c.bf16 %v636, %v632
    %v749 = vpack.c.bf16 %v637, %v633
    %v750 = vpack.c.bf16 %v638, %v634
    %v751 = vpack.c.bf16 %v643, %v639
    %v752 = vpack.c.bf16 %v644, %v640
    %v753 = vpack.c.bf16 %v645, %v641
    %v754 = vpack.c.bf16 %v646, %v642
    %v755 = vpack.c.bf16 %v651, %v647
    %v756 = vpack.c.bf16 %v652, %v648
    %v757 = vpack.c.bf16 %v653, %v649
    %v758 = vpack.c.bf16 %v654, %v650
    %v759 = vpack.c.bf16 %v659, %v655
    %v760 = vpack.c.bf16 %v660, %v656
    %v761 = vpack.c.bf16 %v661, %v657
    %v762 = vpack.c.bf16 %v662, %v658
    %v763 = vpack.c.bf16 %v667, %v663
    %v764 = vpack.c.bf16 %v668, %v664
    %v765 = vpack.c.bf16 %v669, %v665
    %v766 = vpack.c.bf16 %v670, %v666
    %v767 = vpack.c.bf16 %v675, %v671
    %v768 = vpack.c.bf16 %v676, %v672
    %v769 = vpack.c.bf16 %v677, %v673
    %v770 = vpack.c.bf16 %v678, %v674
    %v771 = vpack.c.bf16 %v683, %v679
    %v772 = vpack.c.bf16 %v684, %v680
    %v773 = vpack.c.bf16 %v685, %v681
    %v774 = vpack.c.bf16 %v686, %v682
    %v775 = vpack.c.bf16 %v691, %v687
    %v776 = vpack.c.bf16 %v692, %v688
    %v777 = vpack.c.bf16 %v693, %v689
    %v778 = vpack.c.bf16 %v694, %v690
    %v779 = vpack.c.bf16 %v699, %v695
    %v780 = vpack.c.bf16 %v700, %v696
    %v781 = vpack.c.bf16 %v701, %v697
    %v782 = vpack.c.bf16 %v702, %v698
    %v783 = vpack.c.bf16 %v707, %v703
    %v784 = vpack.c.bf16 %v708, %v704
    %v785 = vpack.c.bf16 %v709, %v705
    %v786 = vpack.c.bf16 %v710, %v706
    %v787 = vpack.c.bf16 %v715, %v711
    %v788 = vpack.c.bf16 %v716, %v712
    %v789 = vpack.c.bf16 %v717, %v713
    %v790 = vpack.c.bf16 %v718, %v714
    %v791 = vpack.c.bf16 %v723, %v719
    %v792 = vpack.c.bf16 %v724, %v720
    %v793 = vpack.c.bf16 %v725, %v721
    %v794 = vpack.c.bf16 %v726, %v722
    %v795 = vpack.c.bf16 %v731, %v727
    %v796 = vpack.c.bf16 %v732, %v728
    %v797 = vpack.c.bf16 %v733, %v729
    %v798 = vpack.c.bf16 %v734, %v730
    %v799 = vld [vmem:[#allocation2] sm:$0xff]
    %v800 = vld [vmem:[#allocation2 + $0x8] sm:$0xf]
    %v801 = vld [vmem:[#allocation2 + $0xc] sm:$0xff]
    %v802 = vld [vmem:[#allocation2 + $0x14] sm:$0xf]
    %v803 = vld [vmem:[#allocation2 + $0x18] sm:$0xff]
    %v804 = vld [vmem:[#allocation2 + $0x20] sm:$0xf]
    %v805 = vld [vmem:[#allocation2 + $0x24] sm:$0xff]
    %v806 = vld [vmem:[#allocation2 + $0x2c] sm:$0xf]
    %v807 = vld [vmem:[#allocation2 + $0x30] sm:$0xff]
    %v808 = vld [vmem:[#allocation2 + $0x38] sm:$0xf]
    %v809 = vld [vmem:[#allocation2 + $0x3c] sm:$0xff]
    %v810 = vld [vmem:[#allocation2 + $0x44] sm:$0xf]
    %v811 = vld [vmem:[#allocation2 + $0x48] sm:$0xff]
    %v812 = vld [vmem:[#allocation2 + $0x50] sm:$0xf]
    %v813 = vld [vmem:[#allocation2 + $0x54] sm:$0xff]
    %v814 = vld [vmem:[#allocation2 + $0x5c] sm:$0xf]
    %v815 = vld [vmem:[#allocation2 + $0x60] sm:$0xff]
    %v816 = vld [vmem:[#allocation2 + $0x68] sm:$0xf]
    %v817 = vld [vmem:[#allocation2 + $0x6c] sm:$0xff]
    %v818 = vld [vmem:[#allocation2 + $0x74] sm:$0xf]
    %v819 = vld [vmem:[#allocation2 + $0x78] sm:$0xff]
    %v820 = vld [vmem:[#allocation2 + $0x80] sm:$0xf]
    %v821 = vld [vmem:[#allocation2 + $0x84] sm:$0xff]
    %v822 = vld [vmem:[#allocation2 + $0x8c] sm:$0xf]
    %v823 = vld [vmem:[#allocation2 + $0x90] sm:$0xff]
    %v824 = vld [vmem:[#allocation2 + $0x98] sm:$0xf]
    %v825 = vld [vmem:[#allocation2 + $0x9c] sm:$0xff]
    %v826 = vld [vmem:[#allocation2 + $0xa4] sm:$0xf]
    %v827 = vld [vmem:[#allocation2 + $0xa8] sm:$0xff]
    %v828 = vld [vmem:[#allocation2 + $0xb0] sm:$0xf]
    %v829 = vld [vmem:[#allocation2 + $0xb4] sm:$0xff]
    %v830 = vld [vmem:[#allocation2 + $0xbc] sm:$0xf]
    %v831 = vld [vmem:[#allocation2 + $0xc0] sm:$0xff]
    %v832 = vld [vmem:[#allocation2 + $0xc8] sm:$0xf]
    %v833 = vld [vmem:[#allocation2 + $0xcc] sm:$0xff]
    %v834 = vld [vmem:[#allocation2 + $0xd4] sm:$0xf]
    %v835 = vld [vmem:[#allocation2 + $0xd8] sm:$0xff]
    %v836 = vld [vmem:[#allocation2 + $0xe0] sm:$0xf]
    %v837 = vld [vmem:[#allocation2 + $0xe4] sm:$0xff]
    %v838 = vld [vmem:[#allocation2 + $0xec] sm:$0xf]
    %v839 = vld [vmem:[#allocation2 + $0xf0] sm:$0xff]
    %v840 = vld [vmem:[#allocation2 + $0xf8] sm:$0xf]
    %v841 = vld [vmem:[#allocation2 + $0xfc] sm:$0xff]
    %v842 = vld [vmem:[#allocation2 + $0x104] sm:$0xf]
    %v843 = vld [vmem:[#allocation2 + $0x108] sm:$0xff]
    %v844 = vld [vmem:[#allocation2 + $0x110] sm:$0xf]
    %v845 = vld [vmem:[#allocation2 + $0x114] sm:$0xff]
    %v846 = vld [vmem:[#allocation2 + $0x11c] sm:$0xf]
    %v847 = vld [vmem:[#allocation2 + $0x120] sm:$0xff]
    %v848 = vld [vmem:[#allocation2 + $0x128] sm:$0xf]
    %v849 = vld [vmem:[#allocation2 + $0x12c] sm:$0xff]
    %v850 = vld [vmem:[#allocation2 + $0x134] sm:$0xf]
    %v851 = vld [vmem:[#allocation2 + $0x138] sm:$0xff]
    %v852 = vld [vmem:[#allocation2 + $0x140] sm:$0xf]
    %v853 = vld [vmem:[#allocation2 + $0x144] sm:$0xff]
    %v854 = vld [vmem:[#allocation2 + $0x14c] sm:$0xf]
    %v855 = vld [vmem:[#allocation2 + $0x150] sm:$0xff]
    %v856 = vld [vmem:[#allocation2 + $0x158] sm:$0xf]
    %v857 = vld [vmem:[#allocation2 + $0x15c] sm:$0xff]
    %v858 = vld [vmem:[#allocation2 + $0x164] sm:$0xf]
    %v859 = vld [vmem:[#allocation2 + $0x168] sm:$0xff]
    %v860 = vld [vmem:[#allocation2 + $0x170] sm:$0xf]
    %v861 = vld [vmem:[#allocation2 + $0x174] sm:$0xff]
    %v862 = vld [vmem:[#allocation2 + $0x17c] sm:$0xf]
    %v863 = vld [vmem:[#allocation2 + $0x180] sm:$0xff]
    %v864 = vld [vmem:[#allocation2 + $0x188] sm:$0xf]
    %v865 = vld [vmem:[#allocation2 + $0x18c] sm:$0xff]
    %v866 = vld [vmem:[#allocation2 + $0x194] sm:$0xf]
    %v867 = vld [vmem:[#allocation2 + $0x198] sm:$0xff]
    %v868 = vld [vmem:[#allocation2 + $0x1a0] sm:$0xf]
    %v869 = vld [vmem:[#allocation2 + $0x1a4] sm:$0xff]
    %v870 = vld [vmem:[#allocation2 + $0x1ac] sm:$0xf]
    %v871 = vld [vmem:[#allocation2 + $0x1b0] sm:$0xff]
    %v872 = vld [vmem:[#allocation2 + $0x1b8] sm:$0xf]
    %v873 = vld [vmem:[#allocation2 + $0x1bc] sm:$0xff]
    %v874 = vld [vmem:[#allocation2 + $0x1c4] sm:$0xf]
    %v875 = vld [vmem:[#allocation2 + $0x1c8] sm:$0xff]
    %v876 = vld [vmem:[#allocation2 + $0x1d0] sm:$0xf]
    %v877 = vld [vmem:[#allocation2 + $0x1d4] sm:$0xff]
    %v878 = vld [vmem:[#allocation2 + $0x1dc] sm:$0xf]
    %v879 = vld [vmem:[#allocation2 + $0x1e0] sm:$0xff]
    %v880 = vld [vmem:[#allocation2 + $0x1e8] sm:$0xf]
    %v881 = vld [vmem:[#allocation2 + $0x1ec] sm:$0xff]
    %v882 = vld [vmem:[#allocation2 + $0x1f4] sm:$0xf]
    %v883 = vld [vmem:[#allocation2 + $0x1f8] sm:$0xff]
    %v884 = vld [vmem:[#allocation2 + $0x200] sm:$0xf]
    %v885 = vld [vmem:[#allocation2 + $0x204] sm:$0xff]
    %v886 = vld [vmem:[#allocation2 + $0x20c] sm:$0xf]
    %v887 = vld [vmem:[#allocation2 + $0x210] sm:$0xff]
    %v888 = vld [vmem:[#allocation2 + $0x218] sm:$0xf]
    %v889 = vld [vmem:[#allocation2 + $0x21c] sm:$0xff]
    %v890 = vld [vmem:[#allocation2 + $0x224] sm:$0xf]
    %v891 = vld [vmem:[#allocation2 + $0x228] sm:$0xff]
    %v892 = vld [vmem:[#allocation2 + $0x230] sm:$0xf]
    %v893 = vld [vmem:[#allocation2 + $0x234] sm:$0xff]
    %v894 = vld [vmem:[#allocation2 + $0x23c] sm:$0xf]
    %v895 = vld [vmem:[#allocation2 + $0x240] sm:$0xff]
    %v896 = vld [vmem:[#allocation2 + $0x248] sm:$0xf]
    %v897 = vld [vmem:[#allocation2 + $0x24c] sm:$0xff]
    %v898 = vld [vmem:[#allocation2 + $0x254] sm:$0xf]
    %v899 = vld [vmem:[%s4] sm:$0x7]
    %v901 = vlaneseq
    %v902 = vshrl.u32 %v901, 7
    %v903 = vsub.s32 0, %v902
    %v904 = vrot.slane %v899, %v903
    %v905 = vlaneseq
    %v906 = vshrl.u32 %v905, 7
    %v907 = vsub.s32 1, %v906
    %v908 = vrot.slane %v899, %v907
    %v909 = vlaneseq
    %v910 = vshrl.u32 %v909, 7
    %v911 = vsub.s32 2, %v910
    %v912 = vrot.slane %v899, %v911
    %v1016 = vunpack.c.l.b16 %v799
    %v1017 = vunpack.c.h.b16 %v799
    %v1018 = vunpack.c.l.b16 %v800
    %v1019 = vunpack.c.l.b16 %v801
    %v1020 = vunpack.c.h.b16 %v801
    %v1021 = vunpack.c.l.b16 %v802
    %v1022 = vunpack.c.l.b16 %v803
    %v1023 = vunpack.c.h.b16 %v803
    %v1024 = vunpack.c.l.b16 %v804
    %v1025 = vunpack.c.l.b16 %v805
    %v1026 = vunpack.c.h.b16 %v805
    %v1027 = vunpack.c.l.b16 %v806
    %v1028 = vunpack.c.l.b16 %v807
    %v1029 = vunpack.c.h.b16 %v807
    %v1030 = vunpack.c.l.b16 %v808
    %v1031 = vunpack.c.l.b16 %v809
    %v1032 = vunpack.c.h.b16 %v809
    %v1033 = vunpack.c.l.b16 %v810
    %v1034 = vunpack.c.l.b16 %v811
    %v1035 = vunpack.c.h.b16 %v811
    %v1036 = vunpack.c.l.b16 %v812
    %v1037 = vunpack.c.l.b16 %v813
    %v1038 = vunpack.c.h.b16 %v813
    %v1039 = vunpack.c.l.b16 %v814
    %v1040 = vunpack.c.l.b16 %v815
    %v1041 = vunpack.c.h.b16 %v815
    %v1042 = vunpack.c.l.b16 %v816
    %v1043 = vunpack.c.l.b16 %v817
    %v1044 = vunpack.c.h.b16 %v817
    %v1045 = vunpack.c.l.b16 %v818
    %v1046 = vunpack.c.l.b16 %v819
    %v1047 = vunpack.c.h.b16 %v819
    %v1048 = vunpack.c.l.b16 %v820
    %v1049 = vunpack.c.l.b16 %v821
    %v1050 = vunpack.c.h.b16 %v821
    %v1051 = vunpack.c.l.b16 %v822
    %v1052 = vunpack.c.l.b16 %v823
    %v1053 = vunpack.c.h.b16 %v823
    %v1054 = vunpack.c.l.b16 %v824
    %v1055 = vunpack.c.l.b16 %v825
    %v1056 = vunpack.c.h.b16 %v825
    %v1057 = vunpack.c.l.b16 %v826
    %v1058 = vunpack.c.l.b16 %v827
    %v1059 = vunpack.c.h.b16 %v827
    %v1060 = vunpack.c.l.b16 %v828
    %v1061 = vunpack.c.l.b16 %v829
    %v1062 = vunpack.c.h.b16 %v829
    %v1063 = vunpack.c.l.b16 %v830
    %v1064 = vunpack.c.l.b16 %v831
    %v1065 = vunpack.c.h.b16 %v831
    %v1066 = vunpack.c.l.b16 %v832
    %v1067 = vunpack.c.l.b16 %v833
    %v1068 = vunpack.c.h.b16 %v833
    %v1069 = vunpack.c.l.b16 %v834
    %v1070 = vunpack.c.l.b16 %v835
    %v1071 = vunpack.c.h.b16 %v835
    %v1072 = vunpack.c.l.b16 %v836
    %v1073 = vunpack.c.l.b16 %v837
    %v1074 = vunpack.c.h.b16 %v837
    %v1075 = vunpack.c.l.b16 %v838
    %v1076 = vunpack.c.l.b16 %v839
    %v1077 = vunpack.c.h.b16 %v839
    %v1078 = vunpack.c.l.b16 %v840
    %v1079 = vunpack.c.l.b16 %v841
    %v1080 = vunpack.c.h.b16 %v841
    %v1081 = vunpack.c.l.b16 %v842
    %v1082 = vunpack.c.l.b16 %v843
    %v1083 = vunpack.c.h.b16 %v843
    %v1084 = vunpack.c.l.b16 %v844
    %v1085 = vunpack.c.l.b16 %v845
    %v1086 = vunpack.c.h.b16 %v845
    %v1087 = vunpack.c.l.b16 %v846
    %v1088 = vunpack.c.l.b16 %v847
    %v1089 = vunpack.c.h.b16 %v847
    %v1090 = vunpack.c.l.b16 %v848
    %v1091 = vunpack.c.l.b16 %v849
    %v1092 = vunpack.c.h.b16 %v849
    %v1093 = vunpack.c.l.b16 %v850
    %v1094 = vunpack.c.l.b16 %v851
    %v1095 = vunpack.c.h.b16 %v851
    %v1096 = vunpack.c.l.b16 %v852
    %v1097 = vunpack.c.l.b16 %v853
    %v1098 = vunpack.c.h.b16 %v853
    %v1099 = vunpack.c.l.b16 %v854
    %v1100 = vunpack.c.l.b16 %v855
    %v1101 = vunpack.c.h.b16 %v855
    %v1102 = vunpack.c.l.b16 %v856
    %v1103 = vunpack.c.l.b16 %v857
    %v1104 = vunpack.c.h.b16 %v857
    %v1105 = vunpack.c.l.b16 %v858
    %v1106 = vunpack.c.l.b16 %v859
    %v1107 = vunpack.c.h.b16 %v859
    %v1108 = vunpack.c.l.b16 %v860
    %v1109 = vunpack.c.l.b16 %v861
    %v1110 = vunpack.c.h.b16 %v861
    %v1111 = vunpack.c.l.b16 %v862
    %v1112 = vunpack.c.l.b16 %v863
    %v1113 = vunpack.c.h.b16 %v863
    %v1114 = vunpack.c.l.b16 %v864
    %v1115 = vunpack.c.l.b16 %v865
    %v1116 = vunpack.c.h.b16 %v865
    %v1117 = vunpack.c.l.b16 %v866
    %v1118 = vunpack.c.l.b16 %v867
    %v1119 = vunpack.c.h.b16 %v867
    %v1120 = vunpack.c.l.b16 %v868
    %v1121 = vunpack.c.l.b16 %v869
    %v1122 = vunpack.c.h.b16 %v869
    %v1123 = vunpack.c.l.b16 %v870
    %v1124 = vunpack.c.l.b16 %v871
    %v1125 = vunpack.c.h.b16 %v871
    %v1126 = vunpack.c.l.b16 %v872
    %v1127 = vunpack.c.l.b16 %v873
    %v1128 = vunpack.c.h.b16 %v873
    %v1129 = vunpack.c.l.b16 %v874
    %v1130 = vunpack.c.l.b16 %v875
    %v1131 = vunpack.c.h.b16 %v875
    %v1132 = vunpack.c.l.b16 %v876
    %v1133 = vunpack.c.l.b16 %v877
    %v1134 = vunpack.c.h.b16 %v877
    %v1135 = vunpack.c.l.b16 %v878
    %v1136 = vunpack.c.l.b16 %v879
    %v1137 = vunpack.c.h.b16 %v879
    %v1138 = vunpack.c.l.b16 %v880
    %v1139 = vunpack.c.l.b16 %v881
    %v1140 = vunpack.c.h.b16 %v881
    %v1141 = vunpack.c.l.b16 %v882
    %v1142 = vunpack.c.l.b16 %v883
    %v1143 = vunpack.c.h.b16 %v883
    %v1144 = vunpack.c.l.b16 %v884
    %v1145 = vunpack.c.l.b16 %v885
    %v1146 = vunpack.c.h.b16 %v885
    %v1147 = vunpack.c.l.b16 %v886
    %v1148 = vunpack.c.l.b16 %v887
    %v1149 = vunpack.c.h.b16 %v887
    %v1150 = vunpack.c.l.b16 %v888
    %v1151 = vunpack.c.l.b16 %v889
    %v1152 = vunpack.c.h.b16 %v889
    %v1153 = vunpack.c.l.b16 %v890
    %v1154 = vunpack.c.l.b16 %v891
    %v1155 = vunpack.c.h.b16 %v891
    %v1156 = vunpack.c.l.b16 %v892
    %v1157 = vunpack.c.l.b16 %v893
    %v1158 = vunpack.c.h.b16 %v893
    %v1159 = vunpack.c.l.b16 %v894
    %v1160 = vunpack.c.l.b16 %v895
    %v1161 = vunpack.c.h.b16 %v895
    %v1162 = vunpack.c.l.b16 %v896
    %v1163 = vunpack.c.l.b16 %v897
    %v1164 = vunpack.c.h.b16 %v897
    %v1165 = vunpack.c.l.b16 %v898
    %v1166 = vpack.c.b16 %v1019, %v1016
    %v1167 = vpack.c.b16 %v1020, %v1017
    %v1168 = vpack.c.b16 %v1021, %v1018
    %v1169 = vpack.c.b16 %v1025, %v1022
    %v1170 = vpack.c.b16 %v1026, %v1023
    %v1171 = vpack.c.b16 %v1027, %v1024
    %v1172 = vpack.c.b16 %v1031, %v1028
    %v1173 = vpack.c.b16 %v1032, %v1029
    %v1174 = vpack.c.b16 %v1033, %v1030
    %v1175 = vpack.c.b16 %v1037, %v1034
    %v1176 = vpack.c.b16 %v1038, %v1035
    %v1177 = vpack.c.b16 %v1039, %v1036
    %v1178 = vpack.c.b16 %v1043, %v1040
    %v1179 = vpack.c.b16 %v1044, %v1041
    %v1180 = vpack.c.b16 %v1045, %v1042
    %v1181 = vpack.c.b16 %v1049, %v1046
    %v1182 = vpack.c.b16 %v1050, %v1047
    %v1183 = vpack.c.b16 %v1051, %v1048
    %v1184 = vpack.c.b16 %v1055, %v1052
    %v1185 = vpack.c.b16 %v1056, %v1053
    %v1186 = vpack.c.b16 %v1057, %v1054
    %v1187 = vpack.c.b16 %v1061, %v1058
    %v1188 = vpack.c.b16 %v1062, %v1059
    %v1189 = vpack.c.b16 %v1063, %v1060
    %v1190 = vpack.c.b16 %v1067, %v1064
    %v1191 = vpack.c.b16 %v1068, %v1065
    %v1192 = vpack.c.b16 %v1069, %v1066
    %v1193 = vpack.c.b16 %v1073, %v1070
    %v1194 = vpack.c.b16 %v1074, %v1071
    %v1195 = vpack.c.b16 %v1075, %v1072
    %v1196 = vpack.c.b16 %v1079, %v1076
    %v1197 = vpack.c.b16 %v1080, %v1077
    %v1198 = vpack.c.b16 %v1081, %v1078
    %v1199 = vpack.c.b16 %v1085, %v1082
    %v1200 = vpack.c.b16 %v1086, %v1083
    %v1201 = vpack.c.b16 %v1087, %v1084
    %v1202 = vpack.c.b16 %v1091, %v1088
    %v1203 = vpack.c.b16 %v1092, %v1089
    %v1204 = vpack.c.b16 %v1093, %v1090
    %v1205 = vpack.c.b16 %v1097, %v1094
    %v1206 = vpack.c.b16 %v1098, %v1095
    %v1207 = vpack.c.b16 %v1099, %v1096
    %v1208 = vpack.c.b16 %v1103, %v1100
    %v1209 = vpack.c.b16 %v1104, %v1101
    %v1210 = vpack.c.b16 %v1105, %v1102
    %v1211 = vpack.c.b16 %v1109, %v1106
    %v1212 = vpack.c.b16 %v1110, %v1107
    %v1213 = vpack.c.b16 %v1111, %v1108
    %v1214 = vpack.c.b16 %v1115, %v1112
    %v1215 = vpack.c.b16 %v1116, %v1113
    %v1216 = vpack.c.b16 %v1117, %v1114
    %v1217 = vpack.c.b16 %v1121, %v1118
    %v1218 = vpack.c.b16 %v1122, %v1119
    %v1219 = vpack.c.b16 %v1123, %v1120
    %v1220 = vpack.c.b16 %v1127, %v1124
    %v1221 = vpack.c.b16 %v1128, %v1125
    %v1222 = vpack.c.b16 %v1129, %v1126
    %v1223 = vpack.c.b16 %v1133, %v1130
    %v1224 = vpack.c.b16 %v1134, %v1131
    %v1225 = vpack.c.b16 %v1135, %v1132
    %v1226 = vpack.c.b16 %v1139, %v1136
    %v1227 = vpack.c.b16 %v1140, %v1137
    %v1228 = vpack.c.b16 %v1141, %v1138
    %v1229 = vpack.c.b16 %v1145, %v1142
    %v1230 = vpack.c.b16 %v1146, %v1143
    %v1231 = vpack.c.b16 %v1147, %v1144
    %v1232 = vpack.c.b16 %v1151, %v1148
    %v1233 = vpack.c.b16 %v1152, %v1149
    %v1234 = vpack.c.b16 %v1153, %v1150
    %v1235 = vpack.c.b16 %v1157, %v1154
    %v1236 = vpack.c.b16 %v1158, %v1155
    %v1237 = vpack.c.b16 %v1159, %v1156
    %v1238 = vpack.c.b16 %v1163, %v1160
    %v1239 = vpack.c.b16 %v1164, %v1161
    %v1240 = vpack.c.b16 %v1165, %v1162
    %vm1316 = vcmask 130048
    %v1318 = vsel %vm1316, %v738, 0
    %v1321 = vsel %vm1316, %v742, 0
    %v1324 = vsel %vm1316, %v746, 0
    %v1327 = vsel %vm1316, %v750, 0
    %v1330 = vsel %vm1316, %v754, 0
    %v1333 = vsel %vm1316, %v758, 0
    %v1336 = vsel %vm1316, %v762, 0
    %v1339 = vsel %vm1316, %v766, 0
    %v1342 = vsel %vm1316, %v770, 0
    %v1345 = vsel %vm1316, %v774, 0
    %v1348 = vsel %vm1316, %v778, 0
    %v1351 = vsel %vm1316, %v782, 0
    %v1354 = vsel %vm1316, %v786, 0
    %v1357 = vsel %vm1316, %v790, 0
    %v1360 = vsel %vm1316, %v794, 0
    %v1363 = vsel %vm1316, %v798, 0
    %1365 = vmatprep.subr.bf16.mxu0 %v1188
    %1366 = vmatpush1.bf16.msra.mxu0 %v1187
    %1367 = vmatprep.subr.bf16.mxu0 %v1185
    %1368 = vmatpush1.bf16.msra.mxu0 %v1184
    %1369 = vmatprep.subr.bf16.mxu0 %v1182
    %1370 = vmatpush1.bf16.msra.mxu0 %v1181
    %1371 = vmatprep.subr.bf16.mxu0 %v1179
    %1372 = vmatpush1.bf16.msra.mxu0 %v1178
    %1373 = vmatprep.subr.bf16.mxu0 %v1176
    %1374 = vmatpush1.bf16.msra.mxu0 %v1175
    %1375 = vmatprep.subr.bf16.mxu0 %v1173
    %1376 = vmatpush1.bf16.msra.mxu0 %v1172
    %1377 = vmatprep.subr.bf16.mxu0 %v1170
    %1378 = vmatpush1.bf16.msra.mxu0 %v1169
    %1379 = vmatprep.subr.bf16.mxu0 %v1167
    %1380 = vmatpush1.bf16.msra.mxu0 %v1166
    %1381 = vmatprep.subr.bf16.mxu0 %v1212
    %1382 = vmatpush2.bf16.msra.mxu0 %v1211
    %1383 = vmatprep.subr.bf16.mxu0 %v1209
    %1384 = vmatpush2.bf16.msra.mxu0 %v1208
    %1385 = vmatprep.subr.bf16.mxu0 %v1206
    %1386 = vmatpush2.bf16.msra.mxu0 %v1205
    %1387 = vmatprep.subr.bf16.mxu0 %v1203
    %1388 = vmatpush2.bf16.msra.mxu0 %v1202
    %1389 = vmatprep.subr.bf16.mxu0 %v1200
    %1390 = vmatpush2.bf16.msra.mxu0 %v1199
    %1391 = vmatprep.subr.bf16.mxu0 %v1197
    %1392 = vmatpush2.bf16.msra.mxu0 %v1196
    %1393 = vmatprep.subr.bf16.mxu0 %v1194
    %1394 = vmatpush2.bf16.msra.mxu0 %v1193
    %1395 = vmatprep.subr.bf16.mxu0 %v1191
    %1396 = vmatpush2.bf16.msra.mxu0 %v1190
    %1397 = vmatprep.mubr.bf16.mxu0 %v736
    %1398 = vmatmul.mubr.bf16.gmra.mxu0 %v735
    %v1399 = vpop.f32.mrf.mxu0
    %v1400 = vadd.f32 %v904, %v1399
    %v1401 = vpop.f32.mrf.mxu0
    %v1402 = vadd.f32 %v908, %v1401
    %v1403 = vpop.f32.mrf.mxu0
    %v1404 = vadd.f32 %v904, %v1403
    %v1405 = vpop.f32.mrf.mxu0
    %v1406 = vadd.f32 %v908, %v1405
    %1407 = vmatprep.mubr.bf16.mxu0 %v740
    %1408 = vmatmul.mubr.bf16.gmra.mxu0 %v739
    %v1409 = vpop.f32.mrf.mxu0
    %v1410 = vadd.f32 %v904, %v1409
    %v1411 = vpop.f32.mrf.mxu0
    %v1412 = vadd.f32 %v908, %v1411
    %v1413 = vpop.f32.mrf.mxu0
    %v1414 = vadd.f32 %v904, %v1413
    %v1415 = vpop.f32.mrf.mxu0
    %v1416 = vadd.f32 %v908, %v1415
    %1417 = vmatprep.mubr.bf16.mxu0 %v744
    %1418 = vmatmul.mubr.bf16.gmra.mxu0 %v743
    %v1419 = vpop.f32.mrf.mxu0
    %v1420 = vadd.f32 %v904, %v1419
    %v1421 = vpop.f32.mrf.mxu0
    %v1422 = vadd.f32 %v908, %v1421
    %v1423 = vpop.f32.mrf.mxu0
    %v1424 = vadd.f32 %v904, %v1423
    %v1425 = vpop.f32.mrf.mxu0
    %v1426 = vadd.f32 %v908, %v1425
    %1427 = vmatprep.mubr.bf16.mxu0 %v748
    %1428 = vmatmul.mubr.bf16.gmra.mxu0 %v747
    %v1429 = vpop.f32.mrf.mxu0
    %v1430 = vadd.f32 %v904, %v1429
    %v1431 = vpop.f32.mrf.mxu0
    %v1432 = vadd.f32 %v908, %v1431
    %v1433 = vpop.f32.mrf.mxu0
    %v1434 = vadd.f32 %v904, %v1433
    %v1435 = vpop.f32.mrf.mxu0
    %v1436 = vadd.f32 %v908, %v1435
    %1437 = vmatprep.mubr.bf16.mxu0 %v752
    %1438 = vmatmul.mubr.bf16.gmra.mxu0 %v751
    %v1439 = vpop.f32.mrf.mxu0
    %v1440 = vadd.f32 %v904, %v1439
    %v1441 = vpop.f32.mrf.mxu0
    %v1442 = vadd.f32 %v908, %v1441
    %v1443 = vpop.f32.mrf.mxu0
    %v1444 = vadd.f32 %v904, %v1443
    %v1445 = vpop.f32.mrf.mxu0
    %v1446 = vadd.f32 %v908, %v1445
    %1447 = vmatprep.mubr.bf16.mxu0 %v756
    %1448 = vmatmul.mubr.bf16.gmra.mxu0 %v755
    %v1449 = vpop.f32.mrf.mxu0
    %v1450 = vadd.f32 %v904, %v1449
    %v1451 = vpop.f32.mrf.mxu0
    %v1452 = vadd.f32 %v908, %v1451
    %v1453 = vpop.f32.mrf.mxu0
    %v1454 = vadd.f32 %v904, %v1453
    %v1455 = vpop.f32.mrf.mxu0
    %v1456 = vadd.f32 %v908, %v1455
    %1457 = vmatprep.mubr.bf16.mxu0 %v760
    %1458 = vmatmul.mubr.bf16.gmra.mxu0 %v759
    %v1459 = vpop.f32.mrf.mxu0
    %v1460 = vadd.f32 %v904, %v1459
    %v1461 = vpop.f32.mrf.mxu0
    %v1462 = vadd.f32 %v908, %v1461
    %v1463 = vpop.f32.mrf.mxu0
    %v1464 = vadd.f32 %v904, %v1463
    %v1465 = vpop.f32.mrf.mxu0
    %v1466 = vadd.f32 %v908, %v1465
    %1467 = vmatprep.mubr.bf16.mxu0 %v764
    %1468 = vmatmul.mubr.bf16.gmra.mxu0 %v763
    %v1469 = vpop.f32.mrf.mxu0
    %v1470 = vadd.f32 %v904, %v1469
    %v1471 = vpop.f32.mrf.mxu0
    %v1472 = vadd.f32 %v908, %v1471
    %v1473 = vpop.f32.mrf.mxu0
    %v1474 = vadd.f32 %v904, %v1473
    %v1475 = vpop.f32.mrf.mxu0
    %v1476 = vadd.f32 %v908, %v1475
    %1477 = vmatprep.mubr.bf16.mxu0 %v768
    %1478 = vmatmul.mubr.bf16.gmra.mxu0 %v767
    %v1479 = vpop.f32.mrf.mxu0
    %v1480 = vadd.f32 %v904, %v1479
    %v1481 = vpop.f32.mrf.mxu0
    %v1482 = vadd.f32 %v908, %v1481
    %v1483 = vpop.f32.mrf.mxu0
    %v1484 = vadd.f32 %v904, %v1483
    %v1485 = vpop.f32.mrf.mxu0
    %v1486 = vadd.f32 %v908, %v1485
    %1487 = vmatprep.mubr.bf16.mxu0 %v772
    %1488 = vmatmul.mubr.bf16.gmra.mxu0 %v771
    %v1489 = vpop.f32.mrf.mxu0
    %v1490 = vadd.f32 %v904, %v1489
    %v1491 = vpop.f32.mrf.mxu0
    %v1492 = vadd.f32 %v908, %v1491
    %v1493 = vpop.f32.mrf.mxu0
    %v1494 = vadd.f32 %v904, %v1493
    %v1495 = vpop.f32.mrf.mxu0
    %v1496 = vadd.f32 %v908, %v1495
    %1497 = vmatprep.mubr.bf16.mxu0 %v776
    %1498 = vmatmul.mubr.bf16.gmra.mxu0 %v775
    %v1499 = vpop.f32.mrf.mxu0
    %v1500 = vadd.f32 %v904, %v1499
    %v1501 = vpop.f32.mrf.mxu0
    %v1502 = vadd.f32 %v908, %v1501
    %v1503 = vpop.f32.mrf.mxu0
    %v1504 = vadd.f32 %v904, %v1503
    %v1505 = vpop.f32.mrf.mxu0
    %v1506 = vadd.f32 %v908, %v1505
    %1507 = vmatprep.mubr.bf16.mxu0 %v780
    %1508 = vmatmul.mubr.bf16.gmra.mxu0 %v779
    %v1509 = vpop.f32.mrf.mxu0
    %v1510 = vadd.f32 %v904, %v1509
    %v1511 = vpop.f32.mrf.mxu0
    %v1512 = vadd.f32 %v908, %v1511
    %v1513 = vpop.f32.mrf.mxu0
    %v1514 = vadd.f32 %v904, %v1513
    %v1515 = vpop.f32.mrf.mxu0
    %v1516 = vadd.f32 %v908, %v1515
    %1517 = vmatprep.mubr.bf16.mxu0 %v784
    %1518 = vmatmul.mubr.bf16.gmra.mxu0 %v783
    %v1519 = vpop.f32.mrf.mxu0
    %v1520 = vadd.f32 %v904, %v1519
    %v1521 = vpop.f32.mrf.mxu0
    %v1522 = vadd.f32 %v908, %v1521
    %v1523 = vpop.f32.mrf.mxu0
    %v1524 = vadd.f32 %v904, %v1523
    %v1525 = vpop.f32.mrf.mxu0
    %v1526 = vadd.f32 %v908, %v1525
    %1527 = vmatprep.mubr.bf16.mxu0 %v788
    %1528 = vmatmul.mubr.bf16.gmra.mxu0 %v787
    %v1529 = vpop.f32.mrf.mxu0
    %v1530 = vadd.f32 %v904, %v1529
    %v1531 = vpop.f32.mrf.mxu0
    %v1532 = vadd.f32 %v908, %v1531
    %v1533 = vpop.f32.mrf.mxu0
    %v1534 = vadd.f32 %v904, %v1533
    %v1535 = vpop.f32.mrf.mxu0
    %v1536 = vadd.f32 %v908, %v1535
    %1537 = vmatprep.mubr.bf16.mxu0 %v792
    %1538 = vmatmul.mubr.bf16.gmra.mxu0 %v791
    %v1539 = vpop.f32.mrf.mxu0
    %v1540 = vadd.f32 %v904, %v1539
    %v1541 = vpop.f32.mrf.mxu0
    %v1542 = vadd.f32 %v908, %v1541
    %v1543 = vpop.f32.mrf.mxu0
    %v1544 = vadd.f32 %v904, %v1543
    %v1545 = vpop.f32.mrf.mxu0
    %v1546 = vadd.f32 %v908, %v1545
    %1547 = vmatprep.mubr.bf16.mxu0 %v796
    %1548 = vmatmul.mubr.bf16.gmra.mxu0 %v795
    %v1549 = vpop.f32.mrf.mxu0
    %v1550 = vadd.f32 %v904, %v1549
    %v1551 = vpop.f32.mrf.mxu0
    %v1552 = vadd.f32 %v908, %v1551
    %v1553 = vpop.f32.mrf.mxu0
    %v1554 = vadd.f32 %v904, %v1553
    %v1555 = vpop.f32.mrf.mxu0
    %v1556 = vadd.f32 %v908, %v1555
    %1557 = vdwg.mxu0
    %1558 = vmatprep.subr.bf16.mxu0 %v1236
    %1559 = vmatpush1.bf16.msra.mxu0 %v1235
    %1560 = vmatprep.subr.bf16.mxu0 %v1233
    %1561 = vmatpush1.bf16.msra.mxu0 %v1232
    %1562 = vmatprep.subr.bf16.mxu0 %v1230
    %1563 = vmatpush1.bf16.msra.mxu0 %v1229
    %1564 = vmatprep.subr.bf16.mxu0 %v1227
    %1565 = vmatpush1.bf16.msra.mxu0 %v1226
    %1566 = vmatprep.subr.bf16.mxu0 %v1224
    %1567 = vmatpush1.bf16.msra.mxu0 %v1223
    %1568 = vmatprep.subr.bf16.mxu0 %v1221
    %1569 = vmatpush1.bf16.msra.mxu0 %v1220
    %1570 = vmatprep.subr.bf16.mxu0 %v1218
    %1571 = vmatpush1.bf16.msra.mxu0 %v1217
    %1572 = vmatprep.subr.bf16.mxu0 %v1215
    %1573 = vmatpush1.bf16.msra.mxu0 %v1214
    %1574 = vmatprep.subr.bf16.mxu0 0
    %1575 = vmatpush2.bf16.msra.mxu0 0
    %1576 = vmatprep.subr.bf16.mxu0 0
    %1577 = vmatpush2.bf16.msra.mxu0 0
    %1578 = vmatprep.subr.bf16.mxu0 0
    %1579 = vmatpush2.bf16.msra.mxu0 0
    %1580 = vmatprep.subr.bf16.mxu0 0
    %1581 = vmatpush2.bf16.msra.mxu0 0
    %1582 = vmatprep.subr.bf16.mxu0 0
    %1583 = vmatpush2.bf16.msra.mxu0 0
    %1584 = vmatprep.subr.bf16.mxu0 0
    %1585 = vmatpush2.bf16.msra.mxu0 0
    %1586 = vmatprep.subr.bf16.mxu0 0
    %1587 = vmatpush2.bf16.msra.mxu0 0
    %1588 = vmatprep.subr.bf16.mxu0 %v1239
    %1589 = vmatpush2.bf16.msra.mxu0 %v1238
    %1590 = vmatprep.mubr.bf16.mxu0 %v1318
    %1591 = vmatmul.mubr.bf16.gmra.mxu0 %v737
    %v1592 = vpop.f32.mrf.mxu0
    %v1593 = vadd.f32 %v1400, %v1592
    %v1594 = vpop.f32.mrf.mxu0
    %v1595 = vadd.f32 %v1402, %v1594
    %v1596 = vpop.f32.mrf.mxu0
    %v1597 = vadd.f32 %v1404, %v1596
    %v1598 = vpop.f32.mrf.mxu0
    %v1599 = vadd.f32 %v1406, %v1598
    %1600 = vmatprep.mubr.bf16.mxu0 %v1321
    %1601 = vmatmul.mubr.bf16.gmra.mxu0 %v741
    %v1602 = vpop.f32.mrf.mxu0
    %v1603 = vadd.f32 %v1410, %v1602
    %v1604 = vpop.f32.mrf.mxu0
    %v1605 = vadd.f32 %v1412, %v1604
    %v1606 = vpop.f32.mrf.mxu0
    %v1607 = vadd.f32 %v1414, %v1606
    %v1608 = vpop.f32.mrf.mxu0
    %v1609 = vadd.f32 %v1416, %v1608
    %1610 = vmatprep.mubr.bf16.mxu0 %v1324
    %1611 = vmatmul.mubr.bf16.gmra.mxu0 %v745
    %v1612 = vpop.f32.mrf.mxu0
    %v1613 = vadd.f32 %v1420, %v1612
    %v1614 = vpop.f32.mrf.mxu0
    %v1615 = vadd.f32 %v1422, %v1614
    %v1616 = vpop.f32.mrf.mxu0
    %v1617 = vadd.f32 %v1424, %v1616
    %v1618 = vpop.f32.mrf.mxu0
    %v1619 = vadd.f32 %v1426, %v1618
    %1620 = vmatprep.mubr.bf16.mxu0 %v1327
    %1621 = vmatmul.mubr.bf16.gmra.mxu0 %v749
    %v1622 = vpop.f32.mrf.mxu0
    %v1623 = vadd.f32 %v1430, %v1622
    %v1624 = vpop.f32.mrf.mxu0
    %v1625 = vadd.f32 %v1432, %v1624
    %v1626 = vpop.f32.mrf.mxu0
    %v1627 = vadd.f32 %v1434, %v1626
    %v1628 = vpop.f32.mrf.mxu0
    %v1629 = vadd.f32 %v1436, %v1628
    %1630 = vmatprep.mubr.bf16.mxu0 %v1330
    %1631 = vmatmul.mubr.bf16.gmra.mxu0 %v753
    %v1632 = vpop.f32.mrf.mxu0
    %v1633 = vadd.f32 %v1440, %v1632
    %v1634 = vpop.f32.mrf.mxu0
    %v1635 = vadd.f32 %v1442, %v1634
    %v1636 = vpop.f32.mrf.mxu0
    %v1637 = vadd.f32 %v1444, %v1636
    %v1638 = vpop.f32.mrf.mxu0
    %v1639 = vadd.f32 %v1446, %v1638
    %1640 = vmatprep.mubr.bf16.mxu0 %v1333
    %1641 = vmatmul.mubr.bf16.gmra.mxu0 %v757
    %v1642 = vpop.f32.mrf.mxu0
    %v1643 = vadd.f32 %v1450, %v1642
    %v1644 = vpop.f32.mrf.mxu0
    %v1645 = vadd.f32 %v1452, %v1644
    %v1646 = vpop.f32.mrf.mxu0
    %v1647 = vadd.f32 %v1454, %v1646
    %v1648 = vpop.f32.mrf.mxu0
    %v1649 = vadd.f32 %v1456, %v1648
    %1650 = vmatprep.mubr.bf16.mxu0 %v1336
    %1651 = vmatmul.mubr.bf16.gmra.mxu0 %v761
    %v1652 = vpop.f32.mrf.mxu0
    %v1653 = vadd.f32 %v1460, %v1652
    %v1654 = vpop.f32.mrf.mxu0
    %v1655 = vadd.f32 %v1462, %v1654
    %v1656 = vpop.f32.mrf.mxu0
    %v1657 = vadd.f32 %v1464, %v1656
    %v1658 = vpop.f32.mrf.mxu0
    %v1659 = vadd.f32 %v1466, %v1658
    %1660 = vmatprep.mubr.bf16.mxu0 %v1339
    %1661 = vmatmul.mubr.bf16.gmra.mxu0 %v765
    %v1662 = vpop.f32.mrf.mxu0
    %v1663 = vadd.f32 %v1470, %v1662
    %v1664 = vpop.f32.mrf.mxu0
    %v1665 = vadd.f32 %v1472, %v1664
    %v1666 = vpop.f32.mrf.mxu0
    %v1667 = vadd.f32 %v1474, %v1666
    %v1668 = vpop.f32.mrf.mxu0
    %v1669 = vadd.f32 %v1476, %v1668
    %1670 = vmatprep.mubr.bf16.mxu0 %v1342
    %1671 = vmatmul.mubr.bf16.gmra.mxu0 %v769
    %v1672 = vpop.f32.mrf.mxu0
    %v1673 = vadd.f32 %v1480, %v1672
    %v1674 = vpop.f32.mrf.mxu0
    %v1675 = vadd.f32 %v1482, %v1674
    %v1676 = vpop.f32.mrf.mxu0
    %v1677 = vadd.f32 %v1484, %v1676
    %v1678 = vpop.f32.mrf.mxu0
    %v1679 = vadd.f32 %v1486, %v1678
    %1680 = vmatprep.mubr.bf16.mxu0 %v1345
    %1681 = vmatmul.mubr.bf16.gmra.mxu0 %v773
    %v1682 = vpop.f32.mrf.mxu0
    %v1683 = vadd.f32 %v1490, %v1682
    %v1684 = vpop.f32.mrf.mxu0
    %v1685 = vadd.f32 %v1492, %v1684
    %v1686 = vpop.f32.mrf.mxu0
    %v1687 = vadd.f32 %v1494, %v1686
    %v1688 = vpop.f32.mrf.mxu0
    %v1689 = vadd.f32 %v1496, %v1688
    %1690 = vmatprep.mubr.bf16.mxu0 %v1348
    %1691 = vmatmul.mubr.bf16.gmra.mxu0 %v777
    %v1692 = vpop.f32.mrf.mxu0
    %v1693 = vadd.f32 %v1500, %v1692
    %v1694 = vpop.f32.mrf.mxu0
    %v1695 = vadd.f32 %v1502, %v1694
    %v1696 = vpop.f32.mrf.mxu0
    %v1697 = vadd.f32 %v1504, %v1696
    %v1698 = vpop.f32.mrf.mxu0
    %v1699 = vadd.f32 %v1506, %v1698
    %1700 = vmatprep.mubr.bf16.mxu0 %v1351
    %1701 = vmatmul.mubr.bf16.gmra.mxu0 %v781
    %v1702 = vpop.f32.mrf.mxu0
    %v1703 = vadd.f32 %v1510, %v1702
    %v1704 = vpop.f32.mrf.mxu0
    %v1705 = vadd.f32 %v1512, %v1704
    %v1706 = vpop.f32.mrf.mxu0
    %v1707 = vadd.f32 %v1514, %v1706
    %v1708 = vpop.f32.mrf.mxu0
    %v1709 = vadd.f32 %v1516, %v1708
    %1710 = vmatprep.mubr.bf16.mxu0 %v1354
    %1711 = vmatmul.mubr.bf16.gmra.mxu0 %v785
    %v1712 = vpop.f32.mrf.mxu0
    %v1713 = vadd.f32 %v1520, %v1712
    %v1714 = vpop.f32.mrf.mxu0
    %v1715 = vadd.f32 %v1522, %v1714
    %v1716 = vpop.f32.mrf.mxu0
    %v1717 = vadd.f32 %v1524, %v1716
    %v1718 = vpop.f32.mrf.mxu0
    %v1719 = vadd.f32 %v1526, %v1718
    %1720 = vmatprep.mubr.bf16.mxu0 %v1357
    %1721 = vmatmul.mubr.bf16.gmra.mxu0 %v789
    %v1722 = vpop.f32.mrf.mxu0
    %v1723 = vadd.f32 %v1530, %v1722
    %v1724 = vpop.f32.mrf.mxu0
    %v1725 = vadd.f32 %v1532, %v1724
    %v1726 = vpop.f32.mrf.mxu0
    %v1727 = vadd.f32 %v1534, %v1726
    %v1728 = vpop.f32.mrf.mxu0
    %v1729 = vadd.f32 %v1536, %v1728
    %1730 = vmatprep.mubr.bf16.mxu0 %v1360
    %1731 = vmatmul.mubr.bf16.gmra.mxu0 %v793
    %v1732 = vpop.f32.mrf.mxu0
    %v1733 = vadd.f32 %v1540, %v1732
    %v1734 = vpop.f32.mrf.mxu0
    %v1735 = vadd.f32 %v1542, %v1734
    %v1736 = vpop.f32.mrf.mxu0
    %v1737 = vadd.f32 %v1544, %v1736
    %v1738 = vpop.f32.mrf.mxu0
    %v1739 = vadd.f32 %v1546, %v1738
    %1740 = vmatprep.mubr.bf16.mxu0 %v1363
    %1741 = vmatmul.mubr.bf16.gmra.mxu0 %v797
    %v1742 = vpop.f32.mrf.mxu0
    %v1743 = vadd.f32 %v1550, %v1742
    %v1744 = vpop.f32.mrf.mxu0
    %v1745 = vadd.f32 %v1552, %v1744
    %v1746 = vpop.f32.mrf.mxu0
    %v1747 = vadd.f32 %v1554, %v1746
    %v1748 = vpop.f32.mrf.mxu0
    %v1749 = vadd.f32 %v1556, %v1748
    %1750 = vdwg.mxu0
    %1751 = vmatprep.subr.bf16.mxu0 0
    %1752 = vmatpush1.bf16.msra.mxu0 %v1189
    %1753 = vmatprep.subr.bf16.mxu0 0
    %1754 = vmatpush1.bf16.msra.mxu0 %v1186
    %1755 = vmatprep.subr.bf16.mxu0 0
    %1756 = vmatpush1.bf16.msra.mxu0 %v1183
    %1757 = vmatprep.subr.bf16.mxu0 0
    %1758 = vmatpush1.bf16.msra.mxu0 %v1180
    %1759 = vmatprep.subr.bf16.mxu0 0
    %1760 = vmatpush1.bf16.msra.mxu0 %v1177
    %1761 = vmatprep.subr.bf16.mxu0 0
    %1762 = vmatpush1.bf16.msra.mxu0 %v1174
    %1763 = vmatprep.subr.bf16.mxu0 0
    %1764 = vmatpush1.bf16.msra.mxu0 %v1171
    %1765 = vmatprep.subr.bf16.mxu0 0
    %1766 = vmatpush1.bf16.msra.mxu0 %v1168
    %1767 = vmatprep.subr.bf16.mxu0 0
    %1768 = vmatpush2.bf16.msra.mxu0 %v1213
    %1769 = vmatprep.subr.bf16.mxu0 0
    %1770 = vmatpush2.bf16.msra.mxu0 %v1210
    %1771 = vmatprep.subr.bf16.mxu0 0
    %1772 = vmatpush2.bf16.msra.mxu0 %v1207
    %1773 = vmatprep.subr.bf16.mxu0 0
    %1774 = vmatpush2.bf16.msra.mxu0 %v1204
    %1775 = vmatprep.subr.bf16.mxu0 0
    %1776 = vmatpush2.bf16.msra.mxu0 %v1201
    %1777 = vmatprep.subr.bf16.mxu0 0
    %1778 = vmatpush2.bf16.msra.mxu0 %v1198
    %1779 = vmatprep.subr.bf16.mxu0 0
    %1780 = vmatpush2.bf16.msra.mxu0 %v1195
    %1781 = vmatprep.subr.bf16.mxu0 0
    %1782 = vmatpush2.bf16.msra.mxu0 %v1192
    %1783 = vmatprep.mubr.bf16.mxu0 %v736
    %1784 = vmatmul.mubr.bf16.gmra.mxu0 %v735
    %v1785 = vpop.f32.mrf.mxu0
    %v1786 = vadd.f32 %v912, %v1785
    %v1787 = vpop.f32.mrf.mxu0
    %v1788 = vpop.f32.mrf.mxu0
    %v1789 = vadd.f32 %v912, %v1788
    %v1790 = vpop.f32.mrf.mxu0
    %1791 = vmatprep.mubr.bf16.mxu0 %v740
    %1792 = vmatmul.mubr.bf16.gmra.mxu0 %v739
    %v1793 = vpop.f32.mrf.mxu0
    %v1794 = vadd.f32 %v912, %v1793
    %v1795 = vpop.f32.mrf.mxu0
    %v1796 = vpop.f32.mrf.mxu0
    %v1797 = vadd.f32 %v912, %v1796
    %v1798 = vpop.f32.mrf.mxu0
    %1799 = vmatprep.mubr.bf16.mxu0 %v744
    %1800 = vmatmul.mubr.bf16.gmra.mxu0 %v743
    %v1801 = vpop.f32.mrf.mxu0
    %v1802 = vadd.f32 %v912, %v1801
    %v1803 = vpop.f32.mrf.mxu0
    %v1804 = vpop.f32.mrf.mxu0
    %v1805 = vadd.f32 %v912, %v1804
    %v1806 = vpop.f32.mrf.mxu0
    %1807 = vmatprep.mubr.bf16.mxu0 %v748
    %1808 = vmatmul.mubr.bf16.gmra.mxu0 %v747
    %v1809 = vpop.f32.mrf.mxu0
    %v1810 = vadd.f32 %v912, %v1809
    %v1811 = vpop.f32.mrf.mxu0
    %v1812 = vpop.f32.mrf.mxu0
    %v1813 = vadd.f32 %v912, %v1812
    %v1814 = vpop.f32.mrf.mxu0
    %1815 = vmatprep.mubr.bf16.mxu0 %v752
    %1816 = vmatmul.mubr.bf16.gmra.mxu0 %v751
    %v1817 = vpop.f32.mrf.mxu0
    %v1818 = vadd.f32 %v912, %v1817
    %v1819 = vpop.f32.mrf.mxu0
    %v1820 = vpop.f32.mrf.mxu0
    %v1821 = vadd.f32 %v912, %v1820
    %v1822 = vpop.f32.mrf.mxu0
    %1823 = vmatprep.mubr.bf16.mxu0 %v756
    %1824 = vmatmul.mubr.bf16.gmra.mxu0 %v755
    %v1825 = vpop.f32.mrf.mxu0
    %v1826 = vadd.f32 %v912, %v1825
    %v1827 = vpop.f32.mrf.mxu0
    %v1828 = vpop.f32.mrf.mxu0
    %v1829 = vadd.f32 %v912, %v1828
    %v1830 = vpop.f32.mrf.mxu0
    %1831 = vmatprep.mubr.bf16.mxu0 %v760
    %1832 = vmatmul.mubr.bf16.gmra.mxu0 %v759
    %v1833 = vpop.f32.mrf.mxu0
    %v1834 = vadd.f32 %v912, %v1833
    %v1835 = vpop.f32.mrf.mxu0
    %v1836 = vpop.f32.mrf.mxu0
    %v1837 = vadd.f32 %v912, %v1836
    %v1838 = vpop.f32.mrf.mxu0
    %1839 = vmatprep.mubr.bf16.mxu0 %v764
    %1840 = vmatmul.mubr.bf16.gmra.mxu0 %v763
    %v1841 = vpop.f32.mrf.mxu0
    %v1842 = vadd.f32 %v912, %v1841
    %v1843 = vpop.f32.mrf.mxu0
    %v1844 = vpop.f32.mrf.mxu0
    %v1845 = vadd.f32 %v912, %v1844
    %v1846 = vpop.f32.mrf.mxu0
    %1847 = vmatprep.mubr.bf16.mxu0 %v768
    %1848 = vmatmul.mubr.bf16.gmra.mxu0 %v767
    %v1849 = vpop.f32.mrf.mxu0
    %v1850 = vadd.f32 %v912, %v1849
    %v1851 = vpop.f32.mrf.mxu0
    %v1852 = vpop.f32.mrf.mxu0
    %v1853 = vadd.f32 %v912, %v1852
    %v1854 = vpop.f32.mrf.mxu0
    %1855 = vmatprep.mubr.bf16.mxu0 %v772
    %1856 = vmatmul.mubr.bf16.gmra.mxu0 %v771
    %v1857 = vpop.f32.mrf.mxu0
    %v1858 = vadd.f32 %v912, %v1857
    %v1859 = vpop.f32.mrf.mxu0
    %v1860 = vpop.f32.mrf.mxu0
    %v1861 = vadd.f32 %v912, %v1860
    %v1862 = vpop.f32.mrf.mxu0
    %1863 = vmatprep.mubr.bf16.mxu0 %v776
    %1864 = vmatmul.mubr.bf16.gmra.mxu0 %v775
    %v1865 = vpop.f32.mrf.mxu0
    %v1866 = vadd.f32 %v912, %v1865
    %v1867 = vpop.f32.mrf.mxu0
    %v1868 = vpop.f32.mrf.mxu0
    %v1869 = vadd.f32 %v912, %v1868
    %v1870 = vpop.f32.mrf.mxu0
    %1871 = vmatprep.mubr.bf16.mxu0 %v780
    %1872 = vmatmul.mubr.bf16.gmra.mxu0 %v779
    %v1873 = vpop.f32.mrf.mxu0
    %v1874 = vadd.f32 %v912, %v1873
    %v1875 = vpop.f32.mrf.mxu0
    %v1876 = vpop.f32.mrf.mxu0
    %v1877 = vadd.f32 %v912, %v1876
    %v1878 = vpop.f32.mrf.mxu0
    %1879 = vmatprep.mubr.bf16.mxu0 %v784
    %1880 = vmatmul.mubr.bf16.gmra.mxu0 %v783
    %v1881 = vpop.f32.mrf.mxu0
    %v1882 = vadd.f32 %v912, %v1881
    %v1883 = vpop.f32.mrf.mxu0
    %v1884 = vpop.f32.mrf.mxu0
    %v1885 = vadd.f32 %v912, %v1884
    %v1886 = vpop.f32.mrf.mxu0
    %1887 = vmatprep.mubr.bf16.mxu0 %v788
    %1888 = vmatmul.mubr.bf16.gmra.mxu0 %v787
    %v1889 = vpop.f32.mrf.mxu0
    %v1890 = vadd.f32 %v912, %v1889
    %v1891 = vpop.f32.mrf.mxu0
    %v1892 = vpop.f32.mrf.mxu0
    %v1893 = vadd.f32 %v912, %v1892
    %v1894 = vpop.f32.mrf.mxu0
    %1895 = vmatprep.mubr.bf16.mxu0 %v792
    %1896 = vmatmul.mubr.bf16.gmra.mxu0 %v791
    %v1897 = vpop.f32.mrf.mxu0
    %v1898 = vadd.f32 %v912, %v1897
    %v1899 = vpop.f32.mrf.mxu0
    %v1900 = vpop.f32.mrf.mxu0
    %v1901 = vadd.f32 %v912, %v1900
    %v1902 = vpop.f32.mrf.mxu0
    %1903 = vmatprep.mubr.bf16.mxu0 %v796
    %1904 = vmatmul.mubr.bf16.gmra.mxu0 %v795
    %v1905 = vpop.f32.mrf.mxu0
    %v1906 = vadd.f32 %v912, %v1905
    %v1907 = vpop.f32.mrf.mxu0
    %v1908 = vpop.f32.mrf.mxu0
    %v1909 = vadd.f32 %v912, %v1908
    %v1910 = vpop.f32.mrf.mxu0
    %1911 = vdwg.mxu0
    %1912 = vmatprep.subr.bf16.mxu0 0
    %1913 = vmatpush1.bf16.msra.mxu0 %v1237
    %1914 = vmatprep.subr.bf16.mxu0 0
    %1915 = vmatpush1.bf16.msra.mxu0 %v1234
    %1916 = vmatprep.subr.bf16.mxu0 0
    %1917 = vmatpush1.bf16.msra.mxu0 %v1231
    %1918 = vmatprep.subr.bf16.mxu0 0
    %1919 = vmatpush1.bf16.msra.mxu0 %v1228
    %1920 = vmatprep.subr.bf16.mxu0 0
    %1921 = vmatpush1.bf16.msra.mxu0 %v1225
    %1922 = vmatprep.subr.bf16.mxu0 0
    %1923 = vmatpush1.bf16.msra.mxu0 %v1222
    %1924 = vmatprep.subr.bf16.mxu0 0
    %1925 = vmatpush1.bf16.msra.mxu0 %v1219
    %1926 = vmatprep.subr.bf16.mxu0 0
    %1927 = vmatpush1.bf16.msra.mxu0 %v1216
    %1928 = vmatprep.subr.bf16.mxu0 0
    %1929 = vmatpush2.bf16.msra.mxu0 0
    %1930 = vmatprep.subr.bf16.mxu0 0
    %1931 = vmatpush2.bf16.msra.mxu0 0
    %1932 = vmatprep.subr.bf16.mxu0 0
    %1933 = vmatpush2.bf16.msra.mxu0 0
    %1934 = vmatprep.subr.bf16.mxu0 0
    %1935 = vmatpush2.bf16.msra.mxu0 0
    %1936 = vmatprep.subr.bf16.mxu0 0
    %1937 = vmatpush2.bf16.msra.mxu0 0
    %1938 = vmatprep.subr.bf16.mxu0 0
    %1939 = vmatpush2.bf16.msra.mxu0 0
    %1940 = vmatprep.subr.bf16.mxu0 0
    %1941 = vmatpush2.bf16.msra.mxu0 0
    %1942 = vmatprep.subr.bf16.mxu0 0
    %1943 = vmatpush2.bf16.msra.mxu0 %v1240
    %1944 = vmatprep.mubr.bf16.mxu0 %v1318
    %1945 = vmatmul.mubr.bf16.gmra.mxu0 %v737
    %v1946 = vpop.f32.mrf.mxu0
    %v1947 = vadd.f32 %v1786, %v1946
    %v1948 = vpop.f32.mrf.mxu0
    %v1949 = vpop.f32.mrf.mxu0
    %v1950 = vadd.f32 %v1789, %v1949
    %v1951 = vpop.f32.mrf.mxu0
    %1952 = vmatprep.mubr.bf16.mxu0 %v1321
    %1953 = vmatmul.mubr.bf16.gmra.mxu0 %v741
    %v1954 = vpop.f32.mrf.mxu0
    %v1955 = vadd.f32 %v1794, %v1954
    %v1956 = vpop.f32.mrf.mxu0
    %v1957 = vpop.f32.mrf.mxu0
    %v1958 = vadd.f32 %v1797, %v1957
    %v1959 = vpop.f32.mrf.mxu0
    %1960 = vmatprep.mubr.bf16.mxu0 %v1324
    %1961 = vmatmul.mubr.bf16.gmra.mxu0 %v745
    %v1962 = vpop.f32.mrf.mxu0
    %v1963 = vadd.f32 %v1802, %v1962
    %v1964 = vpop.f32.mrf.mxu0
    %v1965 = vpop.f32.mrf.mxu0
    %v1966 = vadd.f32 %v1805, %v1965
    %v1967 = vpop.f32.mrf.mxu0
    %1968 = vmatprep.mubr.bf16.mxu0 %v1327
    %1969 = vmatmul.mubr.bf16.gmra.mxu0 %v749
    %v1970 = vpop.f32.mrf.mxu0
    %v1971 = vadd.f32 %v1810, %v1970
    %v1972 = vpop.f32.mrf.mxu0
    %v1973 = vpop.f32.mrf.mxu0
    %v1974 = vadd.f32 %v1813, %v1973
    %v1975 = vpop.f32.mrf.mxu0
    %1976 = vmatprep.mubr.bf16.mxu0 %v1330
    %1977 = vmatmul.mubr.bf16.gmra.mxu0 %v753
    %v1978 = vpop.f32.mrf.mxu0
    %v1979 = vadd.f32 %v1818, %v1978
    %v1980 = vpop.f32.mrf.mxu0
    %v1981 = vpop.f32.mrf.mxu0
    %v1982 = vadd.f32 %v1821, %v1981
    %v1983 = vpop.f32.mrf.mxu0
    %1984 = vmatprep.mubr.bf16.mxu0 %v1333
    %1985 = vmatmul.mubr.bf16.gmra.mxu0 %v757
    %v1986 = vpop.f32.mrf.mxu0
    %v1987 = vadd.f32 %v1826, %v1986
    %v1988 = vpop.f32.mrf.mxu0
    %v1989 = vpop.f32.mrf.mxu0
    %v1990 = vadd.f32 %v1829, %v1989
    %v1991 = vpop.f32.mrf.mxu0
    %1992 = vmatprep.mubr.bf16.mxu0 %v1336
    %1993 = vmatmul.mubr.bf16.gmra.mxu0 %v761
    %v1994 = vpop.f32.mrf.mxu0
    %v1995 = vadd.f32 %v1834, %v1994
    %v1996 = vpop.f32.mrf.mxu0
    %v1997 = vpop.f32.mrf.mxu0
    %v1998 = vadd.f32 %v1837, %v1997
    %v1999 = vpop.f32.mrf.mxu0
    %2000 = vmatprep.mubr.bf16.mxu0 %v1339
    %2001 = vmatmul.mubr.bf16.gmra.mxu0 %v765
    %v2002 = vpop.f32.mrf.mxu0
    %v2003 = vadd.f32 %v1842, %v2002
    %v2004 = vpop.f32.mrf.mxu0
    %v2005 = vpop.f32.mrf.mxu0
    %v2006 = vadd.f32 %v1845, %v2005
    %v2007 = vpop.f32.mrf.mxu0
    %2008 = vmatprep.mubr.bf16.mxu0 %v1342
    %2009 = vmatmul.mubr.bf16.gmra.mxu0 %v769
    %v2010 = vpop.f32.mrf.mxu0
    %v2011 = vadd.f32 %v1850, %v2010
    %v2012 = vpop.f32.mrf.mxu0
    %v2013 = vpop.f32.mrf.mxu0
    %v2014 = vadd.f32 %v1853, %v2013
    %v2015 = vpop.f32.mrf.mxu0
    %2016 = vmatprep.mubr.bf16.mxu0 %v1345
    %2017 = vmatmul.mubr.bf16.gmra.mxu0 %v773
    %v2018 = vpop.f32.mrf.mxu0
    %v2019 = vadd.f32 %v1858, %v2018
    %v2020 = vpop.f32.mrf.mxu0
    %v2021 = vpop.f32.mrf.mxu0
    %v2022 = vadd.f32 %v1861, %v2021
    %v2023 = vpop.f32.mrf.mxu0
    %2024 = vmatprep.mubr.bf16.mxu0 %v1348
    %2025 = vmatmul.mubr.bf16.gmra.mxu0 %v777
    %v2026 = vpop.f32.mrf.mxu0
    %v2027 = vadd.f32 %v1866, %v2026
    %v2028 = vpop.f32.mrf.mxu0
    %v2029 = vpop.f32.mrf.mxu0
    %v2030 = vadd.f32 %v1869, %v2029
    %v2031 = vpop.f32.mrf.mxu0
    %2032 = vmatprep.mubr.bf16.mxu0 %v1351
    %2033 = vmatmul.mubr.bf16.gmra.mxu0 %v781
    %v2034 = vpop.f32.mrf.mxu0
    %v2035 = vadd.f32 %v1874, %v2034
    %v2036 = vpop.f32.mrf.mxu0
    %v2037 = vpop.f32.mrf.mxu0
    %v2038 = vadd.f32 %v1877, %v2037
    %v2039 = vpop.f32.mrf.mxu0
    %2040 = vmatprep.mubr.bf16.mxu0 %v1354
    %2041 = vmatmul.mubr.bf16.gmra.mxu0 %v785
    %v2042 = vpop.f32.mrf.mxu0
    %v2043 = vadd.f32 %v1882, %v2042
    %v2044 = vpop.f32.mrf.mxu0
    %v2045 = vpop.f32.mrf.mxu0
    %v2046 = vadd.f32 %v1885, %v2045
    %v2047 = vpop.f32.mrf.mxu0
    %2048 = vmatprep.mubr.bf16.mxu0 %v1357
    %2049 = vmatmul.mubr.bf16.gmra.mxu0 %v789
    %v2050 = vpop.f32.mrf.mxu0
    %v2051 = vadd.f32 %v1890, %v2050
    %v2052 = vpop.f32.mrf.mxu0
    %v2053 = vpop.f32.mrf.mxu0
    %v2054 = vadd.f32 %v1893, %v2053
    %v2055 = vpop.f32.mrf.mxu0
    %2056 = vmatprep.mubr.bf16.mxu0 %v1360
    %2057 = vmatmul.mubr.bf16.gmra.mxu0 %v793
    %v2058 = vpop.f32.mrf.mxu0
    %v2059 = vadd.f32 %v1898, %v2058
    %v2060 = vpop.f32.mrf.mxu0
    %v2061 = vpop.f32.mrf.mxu0
    %v2062 = vadd.f32 %v1901, %v2061
    %v2063 = vpop.f32.mrf.mxu0
    %2064 = vmatprep.mubr.bf16.mxu0 %v1363
    %2065 = vmatmul.mubr.bf16.gmra.mxu0 %v797
    %v2066 = vpop.f32.mrf.mxu0
    %v2067 = vadd.f32 %v1906, %v2066
    %v2068 = vpop.f32.mrf.mxu0
    %v2069 = vpop.f32.mrf.mxu0
    %v2070 = vadd.f32 %v1909, %v2069
    %v2071 = vpop.f32.mrf.mxu0
    %2072 = vdwg.mxu0
    %v2073 = vmax.f32 %v1593, 0.0
    %v2074 = vmax.f32 %v1595, 0.0
    %v2075 = vmax.f32 %v1947, 0.0
    %v2076 = vmax.f32 %v1597, 0.0
    %v2077 = vmax.f32 %v1599, 0.0
    %v2078 = vmax.f32 %v1950, 0.0
    %v2079 = vmax.f32 %v1603, 0.0
    %v2080 = vmax.f32 %v1605, 0.0
    %v2081 = vmax.f32 %v1955, 0.0
    %v2082 = vmax.f32 %v1607, 0.0
    %v2083 = vmax.f32 %v1609, 0.0
    %v2084 = vmax.f32 %v1958, 0.0
    %v2085 = vmax.f32 %v1613, 0.0
    %v2086 = vmax.f32 %v1615, 0.0
    %v2087 = vmax.f32 %v1963, 0.0
    %v2088 = vmax.f32 %v1617, 0.0
    %v2089 = vmax.f32 %v1619, 0.0
    %v2090 = vmax.f32 %v1966, 0.0
    %v2091 = vmax.f32 %v1623, 0.0
    %v2092 = vmax.f32 %v1625, 0.0
    %v2093 = vmax.f32 %v1971, 0.0
    %v2094 = vmax.f32 %v1627, 0.0
    %v2095 = vmax.f32 %v1629, 0.0
    %v2096 = vmax.f32 %v1974, 0.0
    %v2097 = vmax.f32 %v1633, 0.0
    %v2098 = vmax.f32 %v1635, 0.0
    %v2099 = vmax.f32 %v1979, 0.0
    %v2100 = vmax.f32 %v1637, 0.0
    %v2101 = vmax.f32 %v1639, 0.0
    %v2102 = vmax.f32 %v1982, 0.0
    %v2103 = vmax.f32 %v1643, 0.0
    %v2104 = vmax.f32 %v1645, 0.0
    %v2105 = vmax.f32 %v1987, 0.0
    %v2106 = vmax.f32 %v1647, 0.0
    %v2107 = vmax.f32 %v1649, 0.0
    %v2108 = vmax.f32 %v1990, 0.0
    %v2109 = vmax.f32 %v1653, 0.0
    %v2110 = vmax.f32 %v1655, 0.0
    %v2111 = vmax.f32 %v1995, 0.0
    %v2112 = vmax.f32 %v1657, 0.0
    %v2113 = vmax.f32 %v1659, 0.0
    %v2114 = vmax.f32 %v1998, 0.0
    %v2115 = vmax.f32 %v1663, 0.0
    %v2116 = vmax.f32 %v1665, 0.0
    %v2117 = vmax.f32 %v2003, 0.0
    %v2118 = vmax.f32 %v1667, 0.0
    %v2119 = vmax.f32 %v1669, 0.0
    %v2120 = vmax.f32 %v2006, 0.0
    %v2121 = vmax.f32 %v1673, 0.0
    %v2122 = vmax.f32 %v1675, 0.0
    %v2123 = vmax.f32 %v2011, 0.0
    %v2124 = vmax.f32 %v1677, 0.0
    %v2125 = vmax.f32 %v1679, 0.0
    %v2126 = vmax.f32 %v2014, 0.0
    %v2127 = vmax.f32 %v1683, 0.0
    %v2128 = vmax.f32 %v1685, 0.0
    %v2129 = vmax.f32 %v2019, 0.0
    %v2130 = vmax.f32 %v1687, 0.0
    %v2131 = vmax.f32 %v1689, 0.0
    %v2132 = vmax.f32 %v2022, 0.0
    %v2133 = vmax.f32 %v1693, 0.0
    %v2134 = vmax.f32 %v1695, 0.0
    %v2135 = vmax.f32 %v2027, 0.0
    %v2136 = vmax.f32 %v1697, 0.0
    %v2137 = vmax.f32 %v1699, 0.0
    %v2138 = vmax.f32 %v2030, 0.0
    %v2139 = vmax.f32 %v1703, 0.0
    %v2140 = vmax.f32 %v1705, 0.0
    %v2141 = vmax.f32 %v2035, 0.0
    %v2142 = vmax.f32 %v1707, 0.0
    %v2143 = vmax.f32 %v1709, 0.0
    %v2144 = vmax.f32 %v2038, 0.0
    %v2145 = vmax.f32 %v1713, 0.0
    %v2146 = vmax.f32 %v1715, 0.0
    %v2147 = vmax.f32 %v2043, 0.0
    %v2148 = vmax.f32 %v1717, 0.0
    %v2149 = vmax.f32 %v1719, 0.0
    %v2150 = vmax.f32 %v2046, 0.0
    %v2151 = vmax.f32 %v1723, 0.0
    %v2152 = vmax.f32 %v1725, 0.0
    %v2153 = vmax.f32 %v2051, 0.0
    %v2154 = vmax.f32 %v1727, 0.0
    %v2155 = vmax.f32 %v1729, 0.0
    %v2156 = vmax.f32 %v2054, 0.0
    %v2157 = vmax.f32 %v1733, 0.0
    %v2158 = vmax.f32 %v1735, 0.0
    %v2159 = vmax.f32 %v2059, 0.0
    %v2160 = vmax.f32 %v1737, 0.0
    %v2161 = vmax.f32 %v1739, 0.0
    %v2162 = vmax.f32 %v2062, 0.0
    %v2163 = vmax.f32 %v1743, 0.0
    %v2164 = vmax.f32 %v1745, 0.0
    %v2165 = vmax.f32 %v2067, 0.0
    %v2166 = vmax.f32 %v1747, 0.0
    %v2167 = vmax.f32 %v1749, 0.0
    %v2168 = vmax.f32 %v2070, 0.0
    %v2169 = vpack.c.bf16 %v2076, %v2073
    %v2170 = vpack.c.bf16 %v2077, %v2074
    %v2171 = vpack.c.bf16 %v2078, %v2075
    %v2172 = vpack.c.bf16 %v2082, %v2079
    %v2173 = vpack.c.bf16 %v2083, %v2080
    %v2174 = vpack.c.bf16 %v2084, %v2081
    %v2175 = vpack.c.bf16 %v2088, %v2085
    %v2176 = vpack.c.bf16 %v2089, %v2086
    %v2177 = vpack.c.bf16 %v2090, %v2087
    %v2178 = vpack.c.bf16 %v2094, %v2091
    %v2179 = vpack.c.bf16 %v2095, %v2092
    %v2180 = vpack.c.bf16 %v2096, %v2093
    %v2181 = vpack.c.bf16 %v2100, %v2097
    %v2182 = vpack.c.bf16 %v2101, %v2098
    %v2183 = vpack.c.bf16 %v2102, %v2099
    %v2184 = vpack.c.bf16 %v2106, %v2103
    %v2185 = vpack.c.bf16 %v2107, %v2104
    %v2186 = vpack.c.bf16 %v2108, %v2105
    %v2187 = vpack.c.bf16 %v2112, %v2109
    %v2188 = vpack.c.bf16 %v2113, %v2110
    %v2189 = vpack.c.bf16 %v2114, %v2111
    %v2190 = vpack.c.bf16 %v2118, %v2115
    %v2191 = vpack.c.bf16 %v2119, %v2116
    %v2192 = vpack.c.bf16 %v2120, %v2117
    %v2193 = vpack.c.bf16 %v2124, %v2121
    %v2194 = vpack.c.bf16 %v2125, %v2122
    %v2195 = vpack.c.bf16 %v2126, %v2123
    %v2196 = vpack.c.bf16 %v2130, %v2127
    %v2197 = vpack.c.bf16 %v2131, %v2128
    %v2198 = vpack.c.bf16 %v2132, %v2129
    %v2199 = vpack.c.bf16 %v2136, %v2133
    %v2200 = vpack.c.bf16 %v2137, %v2134
    %v2201 = vpack.c.bf16 %v2138, %v2135
    %v2202 = vpack.c.bf16 %v2142, %v2139
    %v2203 = vpack.c.bf16 %v2143, %v2140
    %v2204 = vpack.c.bf16 %v2144, %v2141
    %v2205 = vpack.c.bf16 %v2148, %v2145
    %v2206 = vpack.c.bf16 %v2149, %v2146
    %v2207 = vpack.c.bf16 %v2150, %v2147
    %v2208 = vpack.c.bf16 %v2154, %v2151
    %v2209 = vpack.c.bf16 %v2155, %v2152
    %v2210 = vpack.c.bf16 %v2156, %v2153
    %v2211 = vpack.c.bf16 %v2160, %v2157
    %v2212 = vpack.c.bf16 %v2161, %v2158
    %v2213 = vpack.c.bf16 %v2162, %v2159
    %v2214 = vpack.c.bf16 %v2166, %v2163
    %v2215 = vpack.c.bf16 %v2167, %v2164
    %v2216 = vpack.c.bf16 %v2168, %v2165
    %v2217 = vld [vmem:[%s5] sm:$0xf]
    %v2218 = vld [vmem:[%s5 + $0x4] sm:$0xf]
    %v2219 = vld [vmem:[%s5 + $0x8] sm:$0xf]
    %v2220 = vld [vmem:[%s5 + $0xc] sm:$0xf]
    %v2221 = vld [vmem:[%s5 + $0x10] sm:$0xf]
    %v2222 = vld [vmem:[%s5 + $0x14] sm:$0xf]
    %v2223 = vld [vmem:[%s5 + $0x18] sm:$0xf]
    %v2224 = vld [vmem:[%s5 + $0x1c] sm:$0xf]
    %v2225 = vld [vmem:[%s5 + $0x20] sm:$0xf]
    %v2226 = vld [vmem:[%s5 + $0x24] sm:$0xf]
    %v2227 = vld [vmem:[%s5 + $0x28] sm:$0xf]
    %v2228 = vld [vmem:[%s5 + $0x2c] sm:$0xf]
    %v2229 = vld [vmem:[%s5 + $0x30] sm:$0xf]
    %v2230 = vld [vmem:[%s5 + $0x34] sm:$0xf]
    %v2231 = vld [vmem:[%s5 + $0x38] sm:$0xf]
    %v2232 = vld [vmem:[%s5 + $0x3c] sm:$0xf]
    %v2233 = vld [vmem:[%s5 + $0x40] sm:$0xf]
    %v2234 = vld [vmem:[%s5 + $0x44] sm:$0xf]
    %v2235 = vld [vmem:[%s5 + $0x48] sm:$0xf]
    %v2236 = vld [vmem:[%s5 + $0x4c] sm:$0xf]
    %v2237 = vld [vmem:[%s5 + $0x50] sm:$0xf]
    %v2238 = vld [vmem:[%s5 + $0x54] sm:$0xf]
    %v2239 = vld [vmem:[%s5 + $0x58] sm:$0xf]
    %v2240 = vld [vmem:[%s5 + $0x5c] sm:$0xf]
    %v2241 = vld [vmem:[%s5 + $0x60] sm:$0xf]
    %v2242 = vld [vmem:[%s5 + $0x64] sm:$0xf]
    %v2243 = vld [vmem:[%s5 + $0x68] sm:$0xf]
    %v2244 = vld [vmem:[%s5 + $0x6c] sm:$0xf]
    %v2245 = vld [vmem:[%s5 + $0x70] sm:$0xf]
    %v2246 = vld [vmem:[%s5 + $0x74] sm:$0xf]
    %v2247 = vld [vmem:[%s5 + $0x78] sm:$0xf]
    %v2248 = vld [vmem:[%s5 + $0x7c] sm:$0xf]
    %v2249 = vld [vmem:[%s5 + $0x80] sm:$0xf]
    %v2250 = vld [vmem:[%s5 + $0x84] sm:$0xf]
    %v2251 = vld [vmem:[%s5 + $0x88] sm:$0xf]
    %v2252 = vld [vmem:[%s5 + $0x8c] sm:$0xf]
    %v2253 = vld [vmem:[%s5 + $0x90] sm:$0xf]
    %v2254 = vld [vmem:[%s5 + $0x94] sm:$0x3]
    %v2255 = vld [vmem:[%s6] sm:$0x1]
    %v2257 = vlaneseq
    %v2258 = vshrl.u32 %v2257, 7
    %v2259 = vsub.s32 0, %v2258
    %v2260 = vrot.slane %v2255, %v2259
    %v2300 = vunpack.c.l.b16 %v2217
    %v2301 = vunpack.c.l.b16 %v2218
    %v2302 = vunpack.c.l.b16 %v2219
    %v2303 = vunpack.c.l.b16 %v2220
    %v2304 = vunpack.c.l.b16 %v2221
    %v2305 = vunpack.c.l.b16 %v2222
    %v2306 = vunpack.c.l.b16 %v2223
    %v2307 = vunpack.c.l.b16 %v2224
    %v2308 = vunpack.c.l.b16 %v2225
    %v2309 = vunpack.c.l.b16 %v2226
    %v2310 = vunpack.c.l.b16 %v2227
    %v2311 = vunpack.c.l.b16 %v2228
    %v2312 = vunpack.c.l.b16 %v2229
    %v2313 = vunpack.c.l.b16 %v2230
    %v2314 = vunpack.c.l.b16 %v2231
    %v2315 = vunpack.c.l.b16 %v2232
    %v2316 = vunpack.c.l.b16 %v2233
    %v2317 = vunpack.c.l.b16 %v2234
    %v2318 = vunpack.c.l.b16 %v2235
    %v2319 = vunpack.c.l.b16 %v2236
    %v2320 = vunpack.c.l.b16 %v2237
    %v2321 = vunpack.c.l.b16 %v2238
    %v2322 = vunpack.c.l.b16 %v2239
    %v2323 = vunpack.c.l.b16 %v2240
    %v2324 = vunpack.c.l.b16 %v2241
    %v2325 = vunpack.c.l.b16 %v2242
    %v2326 = vunpack.c.l.b16 %v2243
    %v2327 = vunpack.c.l.b16 %v2244
    %v2328 = vunpack.c.l.b16 %v2245
    %v2329 = vunpack.c.l.b16 %v2246
    %v2330 = vunpack.c.l.b16 %v2247
    %v2331 = vunpack.c.l.b16 %v2248
    %v2332 = vunpack.c.l.b16 %v2249
    %v2333 = vunpack.c.l.b16 %v2250
    %v2334 = vunpack.c.l.b16 %v2251
    %v2335 = vunpack.c.l.b16 %v2252
    %v2336 = vunpack.c.l.b16 %v2253
    %v2337 = vunpack.c.l.b16 %v2254
    %v2338 = vpack.c.b16 %v2301, %v2300
    %v2339 = vpack.c.b16 %v2303, %v2302
    %v2340 = vpack.c.b16 %v2305, %v2304
    %v2341 = vpack.c.b16 %v2307, %v2306
    %v2342 = vpack.c.b16 %v2309, %v2308
    %v2343 = vpack.c.b16 %v2311, %v2310
    %v2344 = vpack.c.b16 %v2313, %v2312
    %v2345 = vpack.c.b16 %v2315, %v2314
    %v2346 = vpack.c.b16 %v2317, %v2316
    %v2347 = vpack.c.b16 %v2319, %v2318
    %v2348 = vpack.c.b16 %v2321, %v2320
    %v2349 = vpack.c.b16 %v2323, %v2322
    %v2350 = vpack.c.b16 %v2325, %v2324
    %v2351 = vpack.c.b16 %v2327, %v2326
    %v2352 = vpack.c.b16 %v2329, %v2328
    %v2353 = vpack.c.b16 %v2331, %v2330
    %v2354 = vpack.c.b16 %v2333, %v2332
    %v2355 = vpack.c.b16 %v2335, %v2334
    %v2356 = vpack.c.b16 %v2337, %v2336
    %vm2375 = vcmask 359424
    %v2377 = vsel %vm2375, %v2171, 0
    %v2380 = vsel %vm2375, %v2174, 0
    %v2383 = vsel %vm2375, %v2177, 0
    %v2386 = vsel %vm2375, %v2180, 0
    %v2389 = vsel %vm2375, %v2183, 0
    %v2392 = vsel %vm2375, %v2186, 0
    %v2395 = vsel %vm2375, %v2189, 0
    %v2398 = vsel %vm2375, %v2192, 0
    %v2401 = vsel %vm2375, %v2195, 0
    %v2404 = vsel %vm2375, %v2198, 0
    %v2407 = vsel %vm2375, %v2201, 0
    %v2410 = vsel %vm2375, %v2204, 0
    %v2413 = vsel %vm2375, %v2207, 0
    %v2416 = vsel %vm2375, %v2210, 0
    %v2419 = vsel %vm2375, %v2213, 0
    %v2422 = vsel %vm2375, %v2216, 0
    %v2425 = vsel %vm206, %v2356, 0
    %2427 = vmatprep.subr.bf16.mxu0 0
    %2428 = vmatpush1.bf16.msra.mxu0 %v2345
    %2429 = vmatprep.subr.bf16.mxu0 0
    %2430 = vmatpush1.bf16.msra.mxu0 %v2344
    %2431 = vmatprep.subr.bf16.mxu0 0
    %2432 = vmatpush1.bf16.msra.mxu0 %v2343
    %2433 = vmatprep.subr.bf16.mxu0 0
    %2434 = vmatpush1.bf16.msra.mxu0 %v2342
    %2435 = vmatprep.subr.bf16.mxu0 0
    %2436 = vmatpush1.bf16.msra.mxu0 %v2341
    %2437 = vmatprep.subr.bf16.mxu0 0
    %2438 = vmatpush1.bf16.msra.mxu0 %v2340
    %2439 = vmatprep.subr.bf16.mxu0 0
    %2440 = vmatpush1.bf16.msra.mxu0 %v2339
    %2441 = vmatprep.subr.bf16.mxu0 0
    %2442 = vmatpush1.bf16.msra.mxu0 %v2338
    %2443 = vmatprep.subr.bf16.mxu0 0
    %2444 = vmatpush2.bf16.msra.mxu0 %v2353
    %2445 = vmatprep.subr.bf16.mxu0 0
    %2446 = vmatpush2.bf16.msra.mxu0 %v2352
    %2447 = vmatprep.subr.bf16.mxu0 0
    %2448 = vmatpush2.bf16.msra.mxu0 %v2351
    %2449 = vmatprep.subr.bf16.mxu0 0
    %2450 = vmatpush2.bf16.msra.mxu0 %v2350
    %2451 = vmatprep.subr.bf16.mxu0 0
    %2452 = vmatpush2.bf16.msra.mxu0 %v2349
    %2453 = vmatprep.subr.bf16.mxu0 0
    %2454 = vmatpush2.bf16.msra.mxu0 %v2348
    %2455 = vmatprep.subr.bf16.mxu0 0
    %2456 = vmatpush2.bf16.msra.mxu0 %v2347
    %2457 = vmatprep.subr.bf16.mxu0 0
    %2458 = vmatpush2.bf16.msra.mxu0 %v2346
    %2459 = vmatprep.mubr.bf16.mxu0 %v2170
    %2460 = vmatmul.mubr.bf16.gmra.mxu0 %v2169
    %v2461 = vpop.f32.mrf.mxu0
    %v2462 = vadd.f32 %v2260, %v2461
    %v2463 = vpop.f32.mrf.mxu0
    %v2464 = vpop.f32.mrf.mxu0
    %v2465 = vadd.f32 %v2260, %v2464
    %v2466 = vpop.f32.mrf.mxu0
    %2467 = vmatprep.mubr.bf16.mxu0 %v2173
    %2468 = vmatmul.mubr.bf16.gmra.mxu0 %v2172
    %v2469 = vpop.f32.mrf.mxu0
    %v2470 = vadd.f32 %v2260, %v2469
    %v2471 = vpop.f32.mrf.mxu0
    %v2472 = vpop.f32.mrf.mxu0
    %v2473 = vadd.f32 %v2260, %v2472
    %v2474 = vpop.f32.mrf.mxu0
    %2475 = vmatprep.mubr.bf16.mxu0 %v2176
    %2476 = vmatmul.mubr.bf16.gmra.mxu0 %v2175
    %v2477 = vpop.f32.mrf.mxu0
    %v2478 = vadd.f32 %v2260, %v2477
    %v2479 = vpop.f32.mrf.mxu0
    %v2480 = vpop.f32.mrf.mxu0
    %v2481 = vadd.f32 %v2260, %v2480
    %v2482 = vpop.f32.mrf.mxu0
    %2483 = vmatprep.mubr.bf16.mxu0 %v2179
    %2484 = vmatmul.mubr.bf16.gmra.mxu0 %v2178
    %v2485 = vpop.f32.mrf.mxu0
    %v2486 = vadd.f32 %v2260, %v2485
    %v2487 = vpop.f32.mrf.mxu0
    %v2488 = vpop.f32.mrf.mxu0
    %v2489 = vadd.f32 %v2260, %v2488
    %v2490 = vpop.f32.mrf.mxu0
    %2491 = vmatprep.mubr.bf16.mxu0 %v2182
    %2492 = vmatmul.mubr.bf16.gmra.mxu0 %v2181
    %v2493 = vpop.f32.mrf.mxu0
    %v2494 = vadd.f32 %v2260, %v2493
    %v2495 = vpop.f32.mrf.mxu0
    %v2496 = vpop.f32.mrf.mxu0
    %v2497 = vadd.f32 %v2260, %v2496
    %v2498 = vpop.f32.mrf.mxu0
    %2499 = vmatprep.mubr.bf16.mxu0 %v2185
    %2500 = vmatmul.mubr.bf16.gmra.mxu0 %v2184
    %v2501 = vpop.f32.mrf.mxu0
    %v2502 = vadd.f32 %v2260, %v2501
    %v2503 = vpop.f32.mrf.mxu0
    %v2504 = vpop.f32.mrf.mxu0
    %v2505 = vadd.f32 %v2260, %v2504
    %v2506 = vpop.f32.mrf.mxu0
    %2507 = vmatprep.mubr.bf16.mxu0 %v2188
    %2508 = vmatmul.mubr.bf16.gmra.mxu0 %v2187
    %v2509 = vpop.f32.mrf.mxu0
    %v2510 = vadd.f32 %v2260, %v2509
    %v2511 = vpop.f32.mrf.mxu0
    %v2512 = vpop.f32.mrf.mxu0
    %v2513 = vadd.f32 %v2260, %v2512
    %v2514 = vpop.f32.mrf.mxu0
    %2515 = vmatprep.mubr.bf16.mxu0 %v2191
    %2516 = vmatmul.mubr.bf16.gmra.mxu0 %v2190
    %v2517 = vpop.f32.mrf.mxu0
    %v2518 = vadd.f32 %v2260, %v2517
    %v2519 = vpop.f32.mrf.mxu0
    %v2520 = vpop.f32.mrf.mxu0
    %v2521 = vadd.f32 %v2260, %v2520
    %v2522 = vpop.f32.mrf.mxu0
    %2523 = vmatprep.mubr.bf16.mxu0 %v2194
    %2524 = vmatmul.mubr.bf16.gmra.mxu0 %v2193
    %v2525 = vpop.f32.mrf.mxu0
    %v2526 = vadd.f32 %v2260, %v2525
    %v2527 = vpop.f32.mrf.mxu0
    %v2528 = vpop.f32.mrf.mxu0
    %v2529 = vadd.f32 %v2260, %v2528
    %v2530 = vpop.f32.mrf.mxu0
    %2531 = vmatprep.mubr.bf16.mxu0 %v2197
    %2532 = vmatmul.mubr.bf16.gmra.mxu0 %v2196
    %v2533 = vpop.f32.mrf.mxu0
    %v2534 = vadd.f32 %v2260, %v2533
    %v2535 = vpop.f32.mrf.mxu0
    %v2536 = vpop.f32.mrf.mxu0
    %v2537 = vadd.f32 %v2260, %v2536
    %v2538 = vpop.f32.mrf.mxu0
    %2539 = vmatprep.mubr.bf16.mxu0 %v2200
    %2540 = vmatmul.mubr.bf16.gmra.mxu0 %v2199
    %v2541 = vpop.f32.mrf.mxu0
    %v2542 = vadd.f32 %v2260, %v2541
    %v2543 = vpop.f32.mrf.mxu0
    %v2544 = vpop.f32.mrf.mxu0
    %v2545 = vadd.f32 %v2260, %v2544
    %v2546 = vpop.f32.mrf.mxu0
    %2547 = vmatprep.mubr.bf16.mxu0 %v2203
    %2548 = vmatmul.mubr.bf16.gmra.mxu0 %v2202
    %v2549 = vpop.f32.mrf.mxu0
    %v2550 = vadd.f32 %v2260, %v2549
    %v2551 = vpop.f32.mrf.mxu0
    %v2552 = vpop.f32.mrf.mxu0
    %v2553 = vadd.f32 %v2260, %v2552
    %v2554 = vpop.f32.mrf.mxu0
    %2555 = vmatprep.mubr.bf16.mxu0 %v2206
    %2556 = vmatmul.mubr.bf16.gmra.mxu0 %v2205
    %v2557 = vpop.f32.mrf.mxu0
    %v2558 = vadd.f32 %v2260, %v2557
    %v2559 = vpop.f32.mrf.mxu0
    %v2560 = vpop.f32.mrf.mxu0
    %v2561 = vadd.f32 %v2260, %v2560
    %v2562 = vpop.f32.mrf.mxu0
    %2563 = vmatprep.mubr.bf16.mxu0 %v2209
    %2564 = vmatmul.mubr.bf16.gmra.mxu0 %v2208
    %v2565 = vpop.f32.mrf.mxu0
    %v2566 = vadd.f32 %v2260, %v2565
    %v2567 = vpop.f32.mrf.mxu0
    %v2568 = vpop.f32.mrf.mxu0
    %v2569 = vadd.f32 %v2260, %v2568
    %v2570 = vpop.f32.mrf.mxu0
    %2571 = vmatprep.mubr.bf16.mxu0 %v2212
    %2572 = vmatmul.mubr.bf16.gmra.mxu0 %v2211
    %v2573 = vpop.f32.mrf.mxu0
    %v2574 = vadd.f32 %v2260, %v2573
    %v2575 = vpop.f32.mrf.mxu0
    %v2576 = vpop.f32.mrf.mxu0
    %v2577 = vadd.f32 %v2260, %v2576
    %v2578 = vpop.f32.mrf.mxu0
    %2579 = vmatprep.mubr.bf16.mxu0 %v2215
    %2580 = vmatmul.mubr.bf16.gmra.mxu0 %v2214
    %v2581 = vpop.f32.mrf.mxu0
    %v2582 = vadd.f32 %v2260, %v2581
    %v2583 = vpop.f32.mrf.mxu0
    %v2584 = vpop.f32.mrf.mxu0
    %v2585 = vadd.f32 %v2260, %v2584
    %v2586 = vpop.f32.mrf.mxu0
    %2587 = vdwg.mxu0
    %2588 = vmatprep.subr.bf16.mxu0 0
    %2589 = vmatpush1.bf16.msra.mxu0 0
    %2590 = vmatprep.subr.bf16.mxu0 0
    %2591 = vmatpush1.bf16.msra.mxu0 0
    %2592 = vmatprep.subr.bf16.mxu0 0
    %2593 = vmatpush1.bf16.msra.mxu0 0
    %2594 = vmatprep.subr.bf16.mxu0 0
    %2595 = vmatpush1.bf16.msra.mxu0 0
    %2596 = vmatprep.subr.bf16.mxu0 0
    %2597 = vmatpush1.bf16.msra.mxu0 0
    %2598 = vmatprep.subr.bf16.mxu0 0
    %2599 = vmatpush1.bf16.msra.mxu0 %v2425
    %2600 = vmatprep.subr.bf16.mxu0 0
    %2601 = vmatpush1.bf16.msra.mxu0 %v2355
    %2602 = vmatprep.subr.bf16.mxu0 0
    %2603 = vmatpush1.bf16.msra.mxu0 %v2354
    %2604 = vmatprep.subr.bf16.mxu0 0
    %2605 = vmatpush2.bf16.msra.mxu0 0
    %2606 = vmatprep.subr.bf16.mxu0 0
    %2607 = vmatpush2.bf16.msra.mxu0 0
    %2608 = vmatprep.subr.bf16.mxu0 0
    %2609 = vmatpush2.bf16.msra.mxu0 0
    %2610 = vmatprep.subr.bf16.mxu0 0
    %2611 = vmatpush2.bf16.msra.mxu0 0
    %2612 = vmatprep.subr.bf16.mxu0 0
    %2613 = vmatpush2.bf16.msra.mxu0 0
    %2614 = vmatprep.subr.bf16.mxu0 0
    %2615 = vmatpush2.bf16.msra.mxu0 0
    %2616 = vmatprep.subr.bf16.mxu0 0
    %2617 = vmatpush2.bf16.msra.mxu0 0
    %2618 = vmatprep.subr.bf16.mxu0 0
    %2619 = vmatpush2.bf16.msra.mxu0 0
    %2620 = vmatprep.mubr.bf16.mxu0 0
    %2621 = vmatmul.mubr.bf16.gmra.mxu0 %v2377
    %v2622 = vpop.f32.mrf.mxu0
    %v2623 = vadd.f32 %v2462, %v2622
    %v2624 = vpop.f32.mrf.mxu0
    %v2625 = vpop.f32.mrf.mxu0
    %v2626 = vadd.f32 %v2465, %v2625
    %v2627 = vpop.f32.mrf.mxu0
    %2628 = vmatprep.mubr.bf16.mxu0 0
    %2629 = vmatmul.mubr.bf16.gmra.mxu0 %v2380
    %v2630 = vpop.f32.mrf.mxu0
    %v2631 = vadd.f32 %v2470, %v2630
    %v2632 = vpop.f32.mrf.mxu0
    %v2633 = vpop.f32.mrf.mxu0
    %v2634 = vadd.f32 %v2473, %v2633
    %v2635 = vpop.f32.mrf.mxu0
    %2636 = vmatprep.mubr.bf16.mxu0 0
    %2637 = vmatmul.mubr.bf16.gmra.mxu0 %v2383
    %v2638 = vpop.f32.mrf.mxu0
    %v2639 = vadd.f32 %v2478, %v2638
    %v2640 = vpop.f32.mrf.mxu0
    %v2641 = vpop.f32.mrf.mxu0
    %v2642 = vadd.f32 %v2481, %v2641
    %v2643 = vpop.f32.mrf.mxu0
    %2644 = vmatprep.mubr.bf16.mxu0 0
    %2645 = vmatmul.mubr.bf16.gmra.mxu0 %v2386
    %v2646 = vpop.f32.mrf.mxu0
    %v2647 = vadd.f32 %v2486, %v2646
    %v2648 = vpop.f32.mrf.mxu0
    %v2649 = vpop.f32.mrf.mxu0
    %v2650 = vadd.f32 %v2489, %v2649
    %v2651 = vpop.f32.mrf.mxu0
    %2652 = vmatprep.mubr.bf16.mxu0 0
    %2653 = vmatmul.mubr.bf16.gmra.mxu0 %v2389
    %v2654 = vpop.f32.mrf.mxu0
    %v2655 = vadd.f32 %v2494, %v2654
    %v2656 = vpop.f32.mrf.mxu0
    %v2657 = vpop.f32.mrf.mxu0
    %v2658 = vadd.f32 %v2497, %v2657
    %v2659 = vpop.f32.mrf.mxu0
    %2660 = vmatprep.mubr.bf16.mxu0 0
    %2661 = vmatmul.mubr.bf16.gmra.mxu0 %v2392
    %v2662 = vpop.f32.mrf.mxu0
    %v2663 = vadd.f32 %v2502, %v2662
    %v2664 = vpop.f32.mrf.mxu0
    %v2665 = vpop.f32.mrf.mxu0
    %v2666 = vadd.f32 %v2505, %v2665
    %v2667 = vpop.f32.mrf.mxu0
    %2668 = vmatprep.mubr.bf16.mxu0 0
    %2669 = vmatmul.mubr.bf16.gmra.mxu0 %v2395
    %v2670 = vpop.f32.mrf.mxu0
    %v2671 = vadd.f32 %v2510, %v2670
    %v2672 = vpop.f32.mrf.mxu0
    %v2673 = vpop.f32.mrf.mxu0
    %v2674 = vadd.f32 %v2513, %v2673
    %v2675 = vpop.f32.mrf.mxu0
    %2676 = vmatprep.mubr.bf16.mxu0 0
    %2677 = vmatmul.mubr.bf16.gmra.mxu0 %v2398
    %v2678 = vpop.f32.mrf.mxu0
    %v2679 = vadd.f32 %v2518, %v2678
    %v2680 = vpop.f32.mrf.mxu0
    %v2681 = vpop.f32.mrf.mxu0
    %v2682 = vadd.f32 %v2521, %v2681
    %v2683 = vpop.f32.mrf.mxu0
    %2684 = vmatprep.mubr.bf16.mxu0 0
    %2685 = vmatmul.mubr.bf16.gmra.mxu0 %v2401
    %v2686 = vpop.f32.mrf.mxu0
    %v2687 = vadd.f32 %v2526, %v2686
    %v2688 = vpop.f32.mrf.mxu0
    %v2689 = vpop.f32.mrf.mxu0
    %v2690 = vadd.f32 %v2529, %v2689
    %v2691 = vpop.f32.mrf.mxu0
    %2692 = vmatprep.mubr.bf16.mxu0 0
    %2693 = vmatmul.mubr.bf16.gmra.mxu0 %v2404
    %v2694 = vpop.f32.mrf.mxu0
    %v2695 = vadd.f32 %v2534, %v2694
    %v2696 = vpop.f32.mrf.mxu0
    %v2697 = vpop.f32.mrf.mxu0
    %v2698 = vadd.f32 %v2537, %v2697
    %v2699 = vpop.f32.mrf.mxu0
    %2700 = vmatprep.mubr.bf16.mxu0 0
    %2701 = vmatmul.mubr.bf16.gmra.mxu0 %v2407
    %v2702 = vpop.f32.mrf.mxu0
    %v2703 = vadd.f32 %v2542, %v2702
    %v2704 = vpop.f32.mrf.mxu0
    %v2705 = vpop.f32.mrf.mxu0
    %v2706 = vadd.f32 %v2545, %v2705
    %v2707 = vpop.f32.mrf.mxu0
    %2708 = vmatprep.mubr.bf16.mxu0 0
    %2709 = vmatmul.mubr.bf16.gmra.mxu0 %v2410
    %v2710 = vpop.f32.mrf.mxu0
    %v2711 = vadd.f32 %v2550, %v2710
    %v2712 = vpop.f32.mrf.mxu0
    %v2713 = vpop.f32.mrf.mxu0
    %v2714 = vadd.f32 %v2553, %v2713
    %v2715 = vpop.f32.mrf.mxu0
    %2716 = vmatprep.mubr.bf16.mxu0 0
    %2717 = vmatmul.mubr.bf16.gmra.mxu0 %v2413
    %v2718 = vpop.f32.mrf.mxu0
    %v2719 = vadd.f32 %v2558, %v2718
    %v2720 = vpop.f32.mrf.mxu0
    %v2721 = vpop.f32.mrf.mxu0
    %v2722 = vadd.f32 %v2561, %v2721
    %v2723 = vpop.f32.mrf.mxu0
    %2724 = vmatprep.mubr.bf16.mxu0 0
    %2725 = vmatmul.mubr.bf16.gmra.mxu0 %v2416
    %v2726 = vpop.f32.mrf.mxu0
    %v2727 = vadd.f32 %v2566, %v2726
    %v2728 = vpop.f32.mrf.mxu0
    %v2729 = vpop.f32.mrf.mxu0
    %v2730 = vadd.f32 %v2569, %v2729
    %v2731 = vpop.f32.mrf.mxu0
    %2732 = vmatprep.mubr.bf16.mxu0 0
    %2733 = vmatmul.mubr.bf16.gmra.mxu0 %v2419
    %v2734 = vpop.f32.mrf.mxu0
    %v2735 = vadd.f32 %v2574, %v2734
    %v2736 = vpop.f32.mrf.mxu0
    %v2737 = vpop.f32.mrf.mxu0
    %v2738 = vadd.f32 %v2577, %v2737
    %v2739 = vpop.f32.mrf.mxu0
    %2740 = vmatprep.mubr.bf16.mxu0 0
    %2741 = vmatmul.mubr.bf16.gmra.mxu0 %v2422
    %v2742 = vpop.f32.mrf.mxu0
    %v2743 = vadd.f32 %v2582, %v2742
    %v2744 = vpop.f32.mrf.mxu0
    %v2745 = vpop.f32.mrf.mxu0
    %v2746 = vadd.f32 %v2585, %v2745
    %v2747 = vpop.f32.mrf.mxu0
    %2748 = vdwg.mxu0
    %v2749 = vtanh.pop %v2623
    %v2750 = vtanh.pop %v2626
    %v2751 = vtanh.pop %v2631
    %v2752 = vtanh.pop %v2634
    %v2753 = vtanh.pop %v2639
    %v2754 = vtanh.pop %v2642
    %v2755 = vtanh.pop %v2647
    %v2756 = vtanh.pop %v2650
    %v2757 = vtanh.pop %v2655
    %v2758 = vtanh.pop %v2658
    %v2759 = vtanh.pop %v2663
    %v2760 = vtanh.pop %v2666
    %v2761 = vtanh.pop %v2671
    %v2762 = vtanh.pop %v2674
    %v2763 = vtanh.pop %v2679
    %v2764 = vtanh.pop %v2682
    %v2765 = vtanh.pop %v2687
    %v2766 = vtanh.pop %v2690
    %v2767 = vtanh.pop %v2695
    %v2768 = vtanh.pop %v2698
    %v2769 = vtanh.pop %v2703
    %v2770 = vtanh.pop %v2706
    %v2771 = vtanh.pop %v2711
    %v2772 = vtanh.pop %v2714
    %v2773 = vtanh.pop %v2719
    %v2774 = vtanh.pop %v2722
    %v2775 = vtanh.pop %v2727
    %v2776 = vtanh.pop %v2730
    %v2777 = vtanh.pop %v2735
    %v2778 = vtanh.pop %v2738
    %v2779 = vtanh.pop %v2743
    %v2780 = vtanh.pop %v2746
    %2781 = vst [vmem:[#allocation5] sm:$0xff] %v2749
    %2782 = vst [vmem:[#allocation5 + $0x8] sm:$0xff] %v2750
    %2783 = vst [vmem:[#allocation5 + $0x10] sm:$0xff] %v2751
    %2784 = vst [vmem:[#allocation5 + $0x18] sm:$0xff] %v2752
    %2785 = vst [vmem:[#allocation5 + $0x20] sm:$0xff] %v2753
    %2786 = vst [vmem:[#allocation5 + $0x28] sm:$0xff] %v2754
    %2787 = vst [vmem:[#allocation5 + $0x30] sm:$0xff] %v2755
    %2788 = vst [vmem:[#allocation5 + $0x38] sm:$0xff] %v2756
    %2789 = vst [vmem:[#allocation5 + $0x40] sm:$0xff] %v2757
    %2790 = vst [vmem:[#allocation5 + $0x48] sm:$0xff] %v2758
    %2791 = vst [vmem:[#allocation5 + $0x50] sm:$0xff] %v2759
    %2792 = vst [vmem:[#allocation5 + $0x58] sm:$0xff] %v2760
    %2793 = vst [vmem:[#allocation5 + $0x60] sm:$0xff] %v2761
    %2794 = vst [vmem:[#allocation5 + $0x68] sm:$0xff] %v2762
    %2795 = vst [vmem:[#allocation5 + $0x70] sm:$0xff] %v2763
    %2796 = vst [vmem:[#allocation5 + $0x78] sm:$0xff] %v2764
    %2797 = vst [vmem:[#allocation5 + $0x80] sm:$0xff] %v2765
    %2798 = vst [vmem:[#allocation5 + $0x88] sm:$0xff] %v2766
    %2799 = vst [vmem:[#allocation5 + $0x90] sm:$0xff] %v2767
    %2800 = vst [vmem:[#allocation5 + $0x98] sm:$0xff] %v2768
    %2801 = vst [vmem:[#allocation5 + $0xa0] sm:$0xff] %v2769
    %2802 = vst [vmem:[#allocation5 + $0xa8] sm:$0xff] %v2770
    %2803 = vst [vmem:[#allocation5 + $0xb0] sm:$0xff] %v2771
    %2804 = vst [vmem:[#allocation5 + $0xb8] sm:$0xff] %v2772
    %2805 = vst [vmem:[#allocation5 + $0xc0] sm:$0xff] %v2773
    %2806 = vst [vmem:[#allocation5 + $0xc8] sm:$0xff] %v2774
    %2807 = vst [vmem:[#allocation5 + $0xd0] sm:$0xff] %v2775
    %2808 = vst [vmem:[#allocation5 + $0xd8] sm:$0xff] %v2776
    %2809 = vst [vmem:[#allocation5 + $0xe0] sm:$0xff] %v2777
    %2810 = vst [vmem:[#allocation5 + $0xe8] sm:$0xff] %v2778
    %2811 = vst [vmem:[#allocation5 + $0xf0] sm:$0xff] %v2779
    %2812 = vst [vmem:[#allocation5 + $0xf8] sm:$0xff] %v2780
    // Predicated region
    $region34: #{tpu_custom_call.1} parent=1 // pred_check
      _
    $region35: #{tpu_custom_call.1} parent=1 // pred_check_branch
      %2814 = sbr.rel (0) target = $region37
    $region36: #{tpu_custom_call.1} parent=1 // pred_region
      %s2816 = ssub.s32 4096, 4096
      %2817 = vsyncadd [#allocation4], %s2816
      %s2818 = sshll.u32 [#allocation5], 4
      %s2819 = int_to_ptr.vmem [resolvable:$true] %s2818
      %2824 = dma.vmem_to_hbm [thread:$0]  %s2819, 4096, %s7, [#allocation4], 128, 128, 8
    $region37: #{tpu_custom_call.1} parent=1 // pred_fallthru
      _
    // Predicated region
    $region38: #{tpu_custom_call.1} parent=1 // pred_check
      _
    $region39: #{tpu_custom_call.1} parent=1 // pred_check_branch
      %2826 = sbr.rel (0) target = $region41
    $region40: #{tpu_custom_call.1} parent=1 // pred_region
      %2827 = dma.done [#allocation4], 4096
    $region41: #{tpu_custom_call.1} parent=1 // pred_fallthru
      _
    %2828 = vsyncpa [#allocation3], 1
    %2829 = vsyncpa [#allocation4], 1

</llo_original>
